<compile_context>
chip_gen: v5e
topology: v5e:2x2
jax: 0.10.0
libtpu: 0.0.40
codegen_flags: <defaults>
</compile_context>

<pallas_src>
import functools
import math

import jax
import jax.numpy as jnp
from jax import lax
from jax.experimental import pallas as pl
from jax.experimental.pallas import tpu as pltpu


# ----------------------------- in-kernel helpers ---------------------------

def _layernorm(x, g, b, eps):
    # f32 LayerNorm; rsqrt goes to the EUP.
    mean = jnp.mean(x, axis=-1, keepdims=True)
    var = jnp.mean(jnp.square(x - mean), axis=-1, keepdims=True)
    return (x - mean) * lax.rsqrt(var + eps) * g + b


def _gelu_tanh(x):
    # tanh-approximation GELU (single EUP tanh instead of a rational erf).
    # TODO(synk): HF BERT uses the exact erf GELU; tanh approx differs by
    # ~1e-3 relative, acceptable for inference here.
    c = math.sqrt(2.0 / math.pi)
    return 0.5 * x * (1.0 + jnp.tanh(c * (x + 0.044715 * x * x * x)))


# ----------------------------- fused kernel --------------------------------

def _bert_fused_kernel(x_ref, mask_ref,
                       eln_g_ref, eln_b_ref,
                       qkv_w_ref, qkv_b_ref,
                       ao_w_ref, ao_b_ref, aln_g_ref, aln_b_ref,
                       fi_w_ref, fi_b_ref, fo_w_ref, fo_b_ref,
                       fln_g_ref, fln_b_ref,
                       pool_w_ref, pool_b_ref, out_w_ref, out_b_ref,
                       logits_ref,
                       *, batch, seq, n_layers, n_heads, head_dim, eps):
    bf16 = jnp.bfloat16
    f32 = jnp.float32
    h_dim = n_heads * head_dim

    x = x_ref[...]                                    # (B*S, H) f32
    mask = mask_ref[...]                              # (B, S) f32

    # Hoisted additive key mask (HF: (1 - mask) * -10000), materialized once
    # per sequence as an (S, S) tile and reused across all layers/heads.
    mask_add = [
        jnp.broadcast_to((mask[b:b + 1, :] - 1.0) * 10000.0, (seq, seq))
        for b in range(batch)
    ]

    # Embedding LayerNorm over the whole (B*S, H) slab.
    x = _layernorm(x, eln_g_ref[...], eln_b_ref[...], eps)

    for l in range(n_layers):                         # static unroll (L=2)
        # ---- fused QKV projection: one (B*S, H) @ (H, 3H) matmul ----------
        # (1/sqrt(head_dim) is already folded into the Q columns of qkv_w.)
        qkv = jnp.dot(x.astype(bf16), qkv_w_ref[l],
                      preferred_element_type=f32) + qkv_b_ref[l]
        qkv_b16 = qkv.astype(bf16)                    # cast once, slice later

        # ---- per-sequence, per-head attention ------------------------------
        ctx_rows = []
        for b in range(batch):                        # static unroll (B=2)
            r = slice(b * seq, (b + 1) * seq)
            head_ctx = []
            for hd in range(n_heads):                 # static unroll (heads=2)
                c0 = hd * head_dim
                qh = qkv_b16[r, c0:c0 + head_dim]
                kh = qkv_b16[r, h_dim + c0:h_dim + c0 + head_dim]
                vh = qkv_b16[r, 2 * h_dim + c0:2 * h_dim + c0 + head_dim]
                # scores (S, S): contract on head_dim of both (no transpose).
                scores = lax.dot_general(qh, kh, (((1,), (1,)), ((), ())),
                                         preferred_element_type=f32)
                scores = scores + mask_add[b]
                m = jnp.max(scores, axis=-1, keepdims=True)
                p = jnp.exp(scores - m)
                p = p * pl.reciprocal(jnp.sum(p, axis=-1, keepdims=True),
                                      approx=True)
                head_ctx.append(jnp.dot(p.astype(bf16), vh,
                                        preferred_element_type=f32))
            ctx_rows.append(jnp.concatenate(head_ctx, axis=-1))   # (S, H)
        ctx = jnp.concatenate(ctx_rows, axis=0)                   # (B*S, H)

        # ---- single merged attn-out projection + residual + LN -------------
        attn = jnp.dot(ctx.astype(bf16), ao_w_ref[l],
                       preferred_element_type=f32) + ao_b_ref[l]
        x = _layernorm(attn + x, aln_g_ref[l], aln_b_ref[l], eps)

        # ---- FFN ------------------------------------------------------------
        ff = jnp.dot(x.astype(bf16), fi_w_ref[l],
                     preferred_element_type=f32) + fi_b_ref[l]
        ff = _gelu_tanh(ff)
        ff = jnp.dot(ff.astype(bf16), fo_w_ref[l],
                     preferred_element_type=f32) + fo_b_ref[l]
        x = _layernorm(ff + x, fln_g_ref[l], fln_b_ref[l], eps)

    # ---- pooler ([CLS] token of each sequence, tanh) + classifier head -----
    cls = jnp.concatenate([x[b * seq:b * seq + 1, :] for b in range(batch)],
                          axis=0)                                  # (B, H)
    pooled = jnp.tanh(jnp.dot(cls.astype(bf16), pool_w_ref[...],
                              preferred_element_type=f32) + pool_b_ref[...])
    # TODO(synk): nn.Dropout(p=0.3) and BERT-internal dropouts (p=0.1) are
    # identity here (eval-mode inference semantics).
    # Lane-padded (B, 128) logits store; wrapper slices to n_classes.
    logits_ref[...] = jnp.dot(pooled.astype(bf16), out_w_ref[...],
                              preferred_element_type=f32) + out_b_ref[...]


# ----------------------------- model (glue) --------------------------------

CFG = dict(vocab_size=100, hidden=32, heads=2, layers=2, intermediate=128,
           max_pos=16, type_vocab=2, n_classes=3)
LANE = 128   # lane-padded classifier width (output lane-density)


def init_params(key, cfg):
    keys = iter(jax.random.split(key, 32))
    h, im, L = cfg["hidden"], cfg["intermediate"], cfg["layers"]
    c, nh = cfg["n_classes"], cfg["heads"]
    scale = 1.0 / math.sqrt(h // nh)

    def rnd(shape):
        return 0.02 * jax.random.normal(next(keys), shape, jnp.float32)

    # Fold 1/sqrt(head_dim) into the Q columns of the fused QKV projection
    # (one-time parameter transform; no per-call wrapper op, no in-kernel mul).
    qkv_w = rnd((L, h, 3 * h)).at[:, :, :h].multiply(scale)
    qkv_b = jnp.zeros((L, 1, 3 * h), jnp.float32).at[:, :, :h].multiply(scale)

    # Classifier weight/bias lane-padded to N=128 at init time (one-time).
    out_w = jnp.zeros((h, LANE), jnp.float32).at[:, :c].set(rnd((h, c)))
    out_b = jnp.zeros((1, LANE), jnp.float32)

    return {
        "word_emb": rnd((cfg["vocab_size"], h)),
        "pos_emb":  rnd((cfg["max_pos"], h)),
        "type_emb": rnd((cfg["type_vocab"], h)),
        "emb_ln_g": jnp.ones((1, h), jnp.float32),
        "emb_ln_b": jnp.zeros((1, h), jnp.float32),
        "qkv_w":    qkv_w.astype(jnp.bfloat16),
        "qkv_b":    qkv_b,
        "attn_out_w": rnd((L, h, h)).astype(jnp.bfloat16),
        "attn_out_b": jnp.zeros((L, 1, h), jnp.float32),
        "attn_ln_g":  jnp.ones((L, 1, h), jnp.float32),
        "attn_ln_b":  jnp.zeros((L, 1, h), jnp.float32),
        "ffn_in_w":   rnd((L, h, im)).astype(jnp.bfloat16),
        "ffn_in_b":   jnp.zeros((L, 1, im), jnp.float32),
        "ffn_out_w":  rnd((L, im, h)).astype(jnp.bfloat16),
        "ffn_out_b":  jnp.zeros((L, 1, h), jnp.float32),
        "ffn_ln_g":   jnp.ones((L, 1, h), jnp.float32),
        "ffn_ln_b":   jnp.zeros((L, 1, h), jnp.float32),
        "pooler_w":   rnd((h, h)).astype(jnp.bfloat16),
        "pooler_b":   jnp.zeros((1, h), jnp.float32),
        "out_w":      out_w.astype(jnp.bfloat16),   # (h, 128) lane-padded
        "out_b":      out_b,                        # (1, 128) lane-padded
    }


def bert_sent_forward(params, input_ids, attention_mask, cfg):
    b, s = input_ids.shape
    h, nh, L = cfg["hidden"], cfg["heads"], cfg["layers"]
    c = cfg["n_classes"]

    # Embedding gathers kept in plain JAX glue (tiny tables; no Pallas win).
    # TODO(synk): at real BERT dims fuse this gather into the kernel via
    # PrefetchScalarGridSpec + pl.Element row gather to avoid an HBM round
    # trip of the (B,S,H) activation (matters most on v5e bandwidth).
    x = (params["word_emb"][input_ids]
         + params["pos_emb"][:s][None, :, :]
         + params["type_emb"][0][None, None, :]).astype(jnp.float32)   # (B,S,H)
    x = x.reshape(b * s, h)                         # fold batch into matmul M
    mask = attention_mask.astype(jnp.float32)       # (B, S)

    kernel = functools.partial(
        _bert_fused_kernel, batch=b, seq=s, n_layers=L, n_heads=nh,
        head_dim=h // nh, eps=1e-12)

    args = (x, mask,
            params["emb_ln_g"], params["emb_ln_b"],
            params["qkv_w"], params["qkv_b"],
            params["attn_out_w"], params["attn_out_b"],
            params["attn_ln_g"], params["attn_ln_b"],
            params["ffn_in_w"], params["ffn_in_b"],
            params["ffn_out_w"], params["ffn_out_b"],
            params["ffn_ln_g"], params["ffn_ln_b"],
            params["pooler_w"], params["pooler_b"],
            params["out_w"], params["out_b"])

    # Single grid step (no grid): every operand is a whole-array VMEM block,
    # single-buffered (no pipelining needed for one step).
    def vmem_spec():
        return pl.BlockSpec(memory_space=pltpu.MemorySpace.VMEM)

    logits_pad = pl.pallas_call(
        kernel,
        out_shape=jax.ShapeDtypeStruct((b, LANE), jnp.float32),
        in_specs=[vmem_spec() for _ in args],
        out_specs=vmem_spec(),
    )(*args)

    return logits_pad[:, :c]


if __name__ == "__main__":
    key = jax.random.PRNGKey(0)
    pkey, ikey = jax.random.split(key)
    params = init_params(pkey, CFG)

    b, s = 2, 8
    input_ids = jax.random.randint(ikey, (b, s), 0, CFG["vocab_size"],
                                   dtype=jnp.int32)
    attention_mask = jnp.array([[1, 1, 1, 1, 1, 1, 1, 1],
                                [1, 1, 1, 1, 1, 0, 0, 0]], dtype=jnp.int32)

    logits = bert_sent_forward(params, input_ids, attention_mask, CFG)
    logits = jax.block_until_ready(logits)

    assert logits.shape == (b, CFG["n_classes"]), logits.shape
    assert bool(jnp.all(jnp.isfinite(logits)))
    print("KERNEL_OK")
</pallas_src>

<mosaic_0001>
module attributes {stable_mosaic.version = 11 : i64} {
  func.func @_bert_fused_kernel(%arg0: memref<16x32xf32, #tpu.memory_space<vmem>>, %arg1: memref<2x8xf32, #tpu.memory_space<vmem>>, %arg2: memref<1x32xf32, #tpu.memory_space<vmem>>, %arg3: memref<1x32xf32, #tpu.memory_space<vmem>>, %arg4: memref<2x32x96xbf16, #tpu.memory_space<vmem>>, %arg5: memref<2x1x96xf32, #tpu.memory_space<vmem>>, %arg6: memref<2x32x32xbf16, #tpu.memory_space<vmem>>, %arg7: memref<2x1x32xf32, #tpu.memory_space<vmem>>, %arg8: memref<2x1x32xf32, #tpu.memory_space<vmem>>, %arg9: memref<2x1x32xf32, #tpu.memory_space<vmem>>, %arg10: memref<2x32x128xbf16, #tpu.memory_space<vmem>>, %arg11: memref<2x1x128xf32, #tpu.memory_space<vmem>>, %arg12: memref<2x128x32xbf16, #tpu.memory_space<vmem>>, %arg13: memref<2x1x32xf32, #tpu.memory_space<vmem>>, %arg14: memref<2x1x32xf32, #tpu.memory_space<vmem>>, %arg15: memref<2x1x32xf32, #tpu.memory_space<vmem>>, %arg16: memref<32x32xbf16, #tpu.memory_space<vmem>>, %arg17: memref<1x32xf32, #tpu.memory_space<vmem>>, %arg18: memref<32x128xbf16, #tpu.memory_space<vmem>>, %arg19: memref<1x128xf32, #tpu.memory_space<vmem>>, %arg20: memref<2x128xf32, #tpu.memory_space<vmem>>) attributes {dimension_semantics = [], scalar_prefetch = 0 : i64, scratch_operands = 0 : i64, tpu.core_type = #tpu.core_type<tc>} {
    %c0 = arith.constant 0 : index
    %c0_0 = arith.constant 0 : index
    %0 = vector.load %arg0[%c0, %c0_0] : memref<16x32xf32, #tpu.memory_space<vmem>>, vector<16x32xf32>
    %c0_1 = arith.constant 0 : index
    %c0_2 = arith.constant 0 : index
    %1 = vector.load %arg1[%c0_1, %c0_2] : memref<2x8xf32, #tpu.memory_space<vmem>>, vector<2x8xf32>
    %2 = vector.extract_strided_slice %1 {offsets = [0, 0], sizes = [1, 8], strides = [1, 1]} : vector<2x8xf32> to vector<1x8xf32>
    %cst = arith.constant 1.000000e+00 : f32
    %3 = vector.broadcast %cst : f32 to vector<1x8xf32>
    %4 = arith.subf %2, %3 : vector<1x8xf32>
    %cst_3 = arith.constant 1.000000e+04 : f32
    %5 = vector.broadcast %cst_3 : f32 to vector<1x8xf32>
    %6 = arith.mulf %4, %5 : vector<1x8xf32>
    %7 = vector.shape_cast %6 : vector<1x8xf32> to vector<1x8xf32>
    %8 = vector.broadcast %7 : vector<1x8xf32> to vector<8x8xf32>
    %9 = vector.extract_strided_slice %1 {offsets = [1, 0], sizes = [1, 8], strides = [1, 1]} : vector<2x8xf32> to vector<1x8xf32>
    %cst_4 = arith.constant 1.000000e+00 : f32
    %10 = vector.broadcast %cst_4 : f32 to vector<1x8xf32>
    %11 = arith.subf %9, %10 : vector<1x8xf32>
    %cst_5 = arith.constant 1.000000e+04 : f32
    %12 = vector.broadcast %cst_5 : f32 to vector<1x8xf32>
    %13 = arith.mulf %11, %12 : vector<1x8xf32>
    %14 = vector.shape_cast %13 : vector<1x8xf32> to vector<1x8xf32>
    %15 = vector.broadcast %14 : vector<1x8xf32> to vector<8x8xf32>
    %c0_6 = arith.constant 0 : index
    %c0_7 = arith.constant 0 : index
    %16 = vector.load %arg2[%c0_6, %c0_7] : memref<1x32xf32, #tpu.memory_space<vmem>>, vector<1x32xf32>
    %c0_8 = arith.constant 0 : index
    %c0_9 = arith.constant 0 : index
    %17 = vector.load %arg3[%c0_8, %c0_9] : memref<1x32xf32, #tpu.memory_space<vmem>>, vector<1x32xf32>
    %cst_10 = arith.constant dense<0.000000e+00> : vector<16xf32>
    %18 = vector.multi_reduction <add>, %0, %cst_10 [1] : vector<16x32xf32> to vector<16xf32>
    %19 = vector.shape_cast %18 : vector<16xf32> to vector<16x1xf32>
    %cst_11 = arith.constant 3.200000e+01 : f32
    %20 = vector.broadcast %cst_11 : f32 to vector<16x1xf32>
    %21 = arith.divf %19, %20 : vector<16x1xf32>
    %22 = vector.broadcast %21 : vector<16x1xf32> to vector<16x32xf32>
    %23 = arith.subf %0, %22 : vector<16x32xf32>
    %24 = arith.mulf %23, %23 : vector<16x32xf32>
    %cst_12 = arith.constant dense<0.000000e+00> : vector<16xf32>
    %25 = vector.multi_reduction <add>, %24, %cst_12 [1] : vector<16x32xf32> to vector<16xf32>
    %26 = vector.shape_cast %25 : vector<16xf32> to vector<16x1xf32>
    %cst_13 = arith.constant 3.200000e+01 : f32
    %27 = vector.broadcast %cst_13 : f32 to vector<16x1xf32>
    %28 = arith.divf %26, %27 : vector<16x1xf32>
    %29 = vector.broadcast %21 : vector<16x1xf32> to vector<16x32xf32>
    %30 = arith.subf %0, %29 : vector<16x32xf32>
    %cst_14 = arith.constant 9.99999996E-13 : f32
    %31 = vector.broadcast %cst_14 : f32 to vector<16x1xf32>
    %32 = arith.addf %28, %31 : vector<16x1xf32>
    %33 = math.rsqrt %32 : vector<16x1xf32>
    %34 = vector.broadcast %33 : vector<16x1xf32> to vector<16x32xf32>
    %35 = arith.mulf %30, %34 : vector<16x32xf32>
    %36 = vector.broadcast %16 : vector<1x32xf32> to vector<16x32xf32>
    %37 = arith.mulf %35, %36 : vector<16x32xf32>
    %38 = vector.broadcast %17 : vector<1x32xf32> to vector<16x32xf32>
    %39 = arith.addf %37, %38 : vector<16x32xf32>
    %40 = arith.truncf %39 : vector<16x32xf32> to vector<16x32xbf16>
    %c0_15 = arith.constant 0 : index
    %c0_16 = arith.constant 0 : index
    %c0_17 = arith.constant 0 : index
    %41 = vector.load %arg4[%c0_15, %c0_16, %c0_17] : memref<2x32x96xbf16, #tpu.memory_space<vmem>>, vector<1x32x96xbf16>
    %42 = vector.shape_cast %41 : vector<1x32x96xbf16> to vector<32x96xbf16>
    %cst_18 = arith.constant dense<0.000000e+00> : vector<16x96xf32>
    %43 = tpu.matmul %40, %42, %cst_18 {dimension_numbers = #tpu.dot_dimension_numbers<[1], [0], [0], [1], [0, 0, 1, 1], [], []>} : vector<16x32xbf16>, vector<32x96xbf16>, vector<16x96xf32> -> vector<16x96xf32>
    %c0_19 = arith.constant 0 : index
    %c0_20 = arith.constant 0 : index
    %c0_21 = arith.constant 0 : index
    %44 = vector.load %arg5[%c0_19, %c0_20, %c0_21] : memref<2x1x96xf32, #tpu.memory_space<vmem>>, vector<1x1x96xf32>
    %45 = vector.shape_cast %44 : vector<1x1x96xf32> to vector<1x96xf32>
    %46 = vector.broadcast %45 : vector<1x96xf32> to vector<16x96xf32>
    %47 = arith.addf %43, %46 : vector<16x96xf32>
    %48 = arith.truncf %47 : vector<16x96xf32> to vector<16x96xbf16>
    %49 = vector.extract_strided_slice %48 {offsets = [0, 0], sizes = [8, 16], strides = [1, 1]} : vector<16x96xbf16> to vector<8x16xbf16>
    %50 = vector.extract_strided_slice %48 {offsets = [0, 32], sizes = [8, 16], strides = [1, 1]} : vector<16x96xbf16> to vector<8x16xbf16>
    %51 = vector.extract_strided_slice %48 {offsets = [0, 64], sizes = [8, 16], strides = [1, 1]} : vector<16x96xbf16> to vector<8x16xbf16>
    %cst_22 = arith.constant dense<0.000000e+00> : vector<8x8xf32>
    %52 = tpu.matmul %49, %50, %cst_22 {dimension_numbers = #tpu.dot_dimension_numbers<[1], [1], [0], [0], [0, 0, 1, 0], [], []>} : vector<8x16xbf16>, vector<8x16xbf16>, vector<8x8xf32> -> vector<8x8xf32>
    %53 = arith.addf %52, %8 : vector<8x8xf32>
    %cst_23 = arith.constant dense<0xFF800000> : vector<8xf32>
    %54 = vector.multi_reduction <maximumf>, %53, %cst_23 [1] : vector<8x8xf32> to vector<8xf32>
    %55 = vector.shape_cast %54 : vector<8xf32> to vector<8x1xf32>
    %56 = vector.broadcast %55 : vector<8x1xf32> to vector<8x8xf32>
    %57 = arith.subf %53, %56 : vector<8x8xf32>
    %58 = math.exp %57 : vector<8x8xf32>
    %cst_24 = arith.constant dense<0.000000e+00> : vector<8xf32>
    %59 = vector.multi_reduction <add>, %58, %cst_24 [1] : vector<8x8xf32> to vector<8xf32>
    %60 = vector.shape_cast %59 : vector<8xf32> to vector<8x1xf32>
    %61 = tpu.reciprocal %60 {approx = true} : vector<8x1xf32> -> vector<8x1xf32>
    %62 = vector.broadcast %61 : vector<8x1xf32> to vector<8x8xf32>
    %63 = arith.mulf %58, %62 : vector<8x8xf32>
    %64 = arith.truncf %63 : vector<8x8xf32> to vector<8x8xbf16>
    %cst_25 = arith.constant dense<0.000000e+00> : vector<8x16xf32>
    %65 = tpu.matmul %64, %51, %cst_25 {dimension_numbers = #tpu.dot_dimension_numbers<[1], [0], [0], [1], [0, 0, 1, 1], [], []>} : vector<8x8xbf16>, vector<8x16xbf16>, vector<8x16xf32> -> vector<8x16xf32>
    %66 = vector.extract_strided_slice %48 {offsets = [0, 16], sizes = [8, 16], strides = [1, 1]} : vector<16x96xbf16> to vector<8x16xbf16>
    %67 = vector.extract_strided_slice %48 {offsets = [0, 48], sizes = [8, 16], strides = [1, 1]} : vector<16x96xbf16> to vector<8x16xbf16>
    %68 = vector.extract_strided_slice %48 {offsets = [0, 80], sizes = [8, 16], strides = [1, 1]} : vector<16x96xbf16> to vector<8x16xbf16>
    %cst_26 = arith.constant dense<0.000000e+00> : vector<8x8xf32>
    %69 = tpu.matmul %66, %67, %cst_26 {dimension_numbers = #tpu.dot_dimension_numbers<[1], [1], [0], [0], [0, 0, 1, 0], [], []>} : vector<8x16xbf16>, vector<8x16xbf16>, vector<8x8xf32> -> vector<8x8xf32>
    %70 = arith.addf %69, %8 : vector<8x8xf32>
    %cst_27 = arith.constant dense<0xFF800000> : vector<8xf32>
    %71 = vector.multi_reduction <maximumf>, %70, %cst_27 [1] : vector<8x8xf32> to vector<8xf32>
    %72 = vector.shape_cast %71 : vector<8xf32> to vector<8x1xf32>
    %73 = vector.broadcast %72 : vector<8x1xf32> to vector<8x8xf32>
    %74 = arith.subf %70, %73 : vector<8x8xf32>
    %75 = math.exp %74 : vector<8x8xf32>
    %cst_28 = arith.constant dense<0.000000e+00> : vector<8xf32>
    %76 = vector.multi_reduction <add>, %75, %cst_28 [1] : vector<8x8xf32> to vector<8xf32>
    %77 = vector.shape_cast %76 : vector<8xf32> to vector<8x1xf32>
    %78 = tpu.reciprocal %77 {approx = true} : vector<8x1xf32> -> vector<8x1xf32>
    %79 = vector.broadcast %78 : vector<8x1xf32> to vector<8x8xf32>
    %80 = arith.mulf %75, %79 : vector<8x8xf32>
    %81 = arith.truncf %80 : vector<8x8xf32> to vector<8x8xbf16>
    %cst_29 = arith.constant dense<0.000000e+00> : vector<8x16xf32>
    %82 = tpu.matmul %81, %68, %cst_29 {dimension_numbers = #tpu.dot_dimension_numbers<[1], [0], [0], [1], [0, 0, 1, 1], [], []>} : vector<8x8xbf16>, vector<8x16xbf16>, vector<8x16xf32> -> vector<8x16xf32>
    %83 = tpu.concatenate %65, %82 in 1 : vector<8x16xf32>, vector<8x16xf32> -> vector<8x32xf32>
    %84 = vector.extract_strided_slice %48 {offsets = [8, 0], sizes = [8, 16], strides = [1, 1]} : vector<16x96xbf16> to vector<8x16xbf16>
    %85 = vector.extract_strided_slice %48 {offsets = [8, 32], sizes = [8, 16], strides = [1, 1]} : vector<16x96xbf16> to vector<8x16xbf16>
    %86 = vector.extract_strided_slice %48 {offsets = [8, 64], sizes = [8, 16], strides = [1, 1]} : vector<16x96xbf16> to vector<8x16xbf16>
    %cst_30 = arith.constant dense<0.000000e+00> : vector<8x8xf32>
    %87 = tpu.matmul %84, %85, %cst_30 {dimension_numbers = #tpu.dot_dimension_numbers<[1], [1], [0], [0], [0, 0, 1, 0], [], []>} : vector<8x16xbf16>, vector<8x16xbf16>, vector<8x8xf32> -> vector<8x8xf32>
    %88 = arith.addf %87, %15 : vector<8x8xf32>
    %cst_31 = arith.constant dense<0xFF800000> : vector<8xf32>
    %89 = vector.multi_reduction <maximumf>, %88, %cst_31 [1] : vector<8x8xf32> to vector<8xf32>
    %90 = vector.shape_cast %89 : vector<8xf32> to vector<8x1xf32>
    %91 = vector.broadcast %90 : vector<8x1xf32> to vector<8x8xf32>
    %92 = arith.subf %88, %91 : vector<8x8xf32>
    %93 = math.exp %92 : vector<8x8xf32>
    %cst_32 = arith.constant dense<0.000000e+00> : vector<8xf32>
    %94 = vector.multi_reduction <add>, %93, %cst_32 [1] : vector<8x8xf32> to vector<8xf32>
    %95 = vector.shape_cast %94 : vector<8xf32> to vector<8x1xf32>
    %96 = tpu.reciprocal %95 {approx = true} : vector<8x1xf32> -> vector<8x1xf32>
    %97 = vector.broadcast %96 : vector<8x1xf32> to vector<8x8xf32>
    %98 = arith.mulf %93, %97 : vector<8x8xf32>
    %99 = arith.truncf %98 : vector<8x8xf32> to vector<8x8xbf16>
    %cst_33 = arith.constant dense<0.000000e+00> : vector<8x16xf32>
    %100 = tpu.matmul %99, %86, %cst_33 {dimension_numbers = #tpu.dot_dimension_numbers<[1], [0], [0], [1], [0, 0, 1, 1], [], []>} : vector<8x8xbf16>, vector<8x16xbf16>, vector<8x16xf32> -> vector<8x16xf32>
    %101 = vector.extract_strided_slice %48 {offsets = [8, 16], sizes = [8, 16], strides = [1, 1]} : vector<16x96xbf16> to vector<8x16xbf16>
    %102 = vector.extract_strided_slice %48 {offsets = [8, 48], sizes = [8, 16], strides = [1, 1]} : vector<16x96xbf16> to vector<8x16xbf16>
    %103 = vector.extract_strided_slice %48 {offsets = [8, 80], sizes = [8, 16], strides = [1, 1]} : vector<16x96xbf16> to vector<8x16xbf16>
    %cst_34 = arith.constant dense<0.000000e+00> : vector<8x8xf32>
    %104 = tpu.matmul %101, %102, %cst_34 {dimension_numbers = #tpu.dot_dimension_numbers<[1], [1], [0], [0], [0, 0, 1, 0], [], []>} : vector<8x16xbf16>, vector<8x16xbf16>, vector<8x8xf32> -> vector<8x8xf32>
    %105 = arith.addf %104, %15 : vector<8x8xf32>
    %cst_35 = arith.constant dense<0xFF800000> : vector<8xf32>
    %106 = vector.multi_reduction <maximumf>, %105, %cst_35 [1] : vector<8x8xf32> to vector<8xf32>
    %107 = vector.shape_cast %106 : vector<8xf32> to vector<8x1xf32>
    %108 = vector.broadcast %107 : vector<8x1xf32> to vector<8x8xf32>
    %109 = arith.subf %105, %108 : vector<8x8xf32>
    %110 = math.exp %109 : vector<8x8xf32>
    %cst_36 = arith.constant dense<0.000000e+00> : vector<8xf32>
    %111 = vector.multi_reduction <add>, %110, %cst_36 [1] : vector<8x8xf32> to vector<8xf32>
    %112 = vector.shape_cast %111 : vector<8xf32> to vector<8x1xf32>
    %113 = tpu.reciprocal %112 {approx = true} : vector<8x1xf32> -> vector<8x1xf32>
    %114 = vector.broadcast %113 : vector<8x1xf32> to vector<8x8xf32>
    %115 = arith.mulf %110, %114 : vector<8x8xf32>
    %116 = arith.truncf %115 : vector<8x8xf32> to vector<8x8xbf16>
    %cst_37 = arith.constant dense<0.000000e+00> : vector<8x16xf32>
    %117 = tpu.matmul %116, %103, %cst_37 {dimension_numbers = #tpu.dot_dimension_numbers<[1], [0], [0], [1], [0, 0, 1, 1], [], []>} : vector<8x8xbf16>, vector<8x16xbf16>, vector<8x16xf32> -> vector<8x16xf32>
    %118 = tpu.concatenate %100, %117 in 1 : vector<8x16xf32>, vector<8x16xf32> -> vector<8x32xf32>
    %119 = tpu.concatenate %83, %118 in 0 : vector<8x32xf32>, vector<8x32xf32> -> vector<16x32xf32>
    %120 = arith.truncf %119 : vector<16x32xf32> to vector<16x32xbf16>
    %c0_38 = arith.constant 0 : index
    %c0_39 = arith.constant 0 : index
    %c0_40 = arith.constant 0 : index
    %121 = vector.load %arg6[%c0_38, %c0_39, %c0_40] : memref<2x32x32xbf16, #tpu.memory_space<vmem>>, vector<1x32x32xbf16>
    %122 = vector.shape_cast %121 : vector<1x32x32xbf16> to vector<32x32xbf16>
    %cst_41 = arith.constant dense<0.000000e+00> : vector<16x32xf32>
    %123 = tpu.matmul %120, %122, %cst_41 {dimension_numbers = #tpu.dot_dimension_numbers<[1], [0], [0], [1], [0, 0, 1, 1], [], []>} : vector<16x32xbf16>, vector<32x32xbf16>, vector<16x32xf32> -> vector<16x32xf32>
    %c0_42 = arith.constant 0 : index
    %c0_43 = arith.constant 0 : index
    %c0_44 = arith.constant 0 : index
    %124 = vector.load %arg7[%c0_42, %c0_43, %c0_44] : memref<2x1x32xf32, #tpu.memory_space<vmem>>, vector<1x1x32xf32>
    %125 = vector.shape_cast %124 : vector<1x1x32xf32> to vector<1x32xf32>
    %126 = vector.broadcast %125 : vector<1x32xf32> to vector<16x32xf32>
    %127 = arith.addf %123, %126 : vector<16x32xf32>
    %128 = arith.addf %127, %39 : vector<16x32xf32>
    %c0_45 = arith.constant 0 : index
    %c0_46 = arith.constant 0 : index
    %c0_47 = arith.constant 0 : index
    %129 = vector.load %arg8[%c0_45, %c0_46, %c0_47] : memref<2x1x32xf32, #tpu.memory_space<vmem>>, vector<1x1x32xf32>
    %130 = vector.shape_cast %129 : vector<1x1x32xf32> to vector<1x32xf32>
    %c0_48 = arith.constant 0 : index
    %c0_49 = arith.constant 0 : index
    %c0_50 = arith.constant 0 : index
    %131 = vector.load %arg9[%c0_48, %c0_49, %c0_50] : memref<2x1x32xf32, #tpu.memory_space<vmem>>, vector<1x1x32xf32>
    %132 = vector.shape_cast %131 : vector<1x1x32xf32> to vector<1x32xf32>
    %cst_51 = arith.constant dense<0.000000e+00> : vector<16xf32>
    %133 = vector.multi_reduction <add>, %128, %cst_51 [1] : vector<16x32xf32> to vector<16xf32>
    %134 = vector.shape_cast %133 : vector<16xf32> to vector<16x1xf32>
    %cst_52 = arith.constant 3.200000e+01 : f32
    %135 = vector.broadcast %cst_52 : f32 to vector<16x1xf32>
    %136 = arith.divf %134, %135 : vector<16x1xf32>
    %137 = vector.broadcast %136 : vector<16x1xf32> to vector<16x32xf32>
    %138 = arith.subf %128, %137 : vector<16x32xf32>
    %139 = arith.mulf %138, %138 : vector<16x32xf32>
    %cst_53 = arith.constant dense<0.000000e+00> : vector<16xf32>
    %140 = vector.multi_reduction <add>, %139, %cst_53 [1] : vector<16x32xf32> to vector<16xf32>
    %141 = vector.shape_cast %140 : vector<16xf32> to vector<16x1xf32>
    %cst_54 = arith.constant 3.200000e+01 : f32
    %142 = vector.broadcast %cst_54 : f32 to vector<16x1xf32>
    %143 = arith.divf %141, %142 : vector<16x1xf32>
    %144 = vector.broadcast %136 : vector<16x1xf32> to vector<16x32xf32>
    %145 = arith.subf %128, %144 : vector<16x32xf32>
    %cst_55 = arith.constant 9.99999996E-13 : f32
    %146 = vector.broadcast %cst_55 : f32 to vector<16x1xf32>
    %147 = arith.addf %143, %146 : vector<16x1xf32>
    %148 = math.rsqrt %147 : vector<16x1xf32>
    %149 = vector.broadcast %148 : vector<16x1xf32> to vector<16x32xf32>
    %150 = arith.mulf %145, %149 : vector<16x32xf32>
    %151 = vector.broadcast %130 : vector<1x32xf32> to vector<16x32xf32>
    %152 = arith.mulf %150, %151 : vector<16x32xf32>
    %153 = vector.broadcast %132 : vector<1x32xf32> to vector<16x32xf32>
    %154 = arith.addf %152, %153 : vector<16x32xf32>
    %155 = arith.truncf %154 : vector<16x32xf32> to vector<16x32xbf16>
    %c0_56 = arith.constant 0 : index
    %c0_57 = arith.constant 0 : index
    %c0_58 = arith.constant 0 : index
    %156 = vector.load %arg10[%c0_56, %c0_57, %c0_58] : memref<2x32x128xbf16, #tpu.memory_space<vmem>>, vector<1x32x128xbf16>
    %157 = vector.shape_cast %156 : vector<1x32x128xbf16> to vector<32x128xbf16>
    %cst_59 = arith.constant dense<0.000000e+00> : vector<16x128xf32>
    %158 = tpu.matmul %155, %157, %cst_59 {dimension_numbers = #tpu.dot_dimension_numbers<[1], [0], [0], [1], [0, 0, 1, 1], [], []>} : vector<16x32xbf16>, vector<32x128xbf16>, vector<16x128xf32> -> vector<16x128xf32>
    %c0_60 = arith.constant 0 : index
    %c0_61 = arith.constant 0 : index
    %c0_62 = arith.constant 0 : index
    %159 = vector.load %arg11[%c0_60, %c0_61, %c0_62] : memref<2x1x128xf32, #tpu.memory_space<vmem>>, vector<1x1x128xf32>
    %160 = vector.shape_cast %159 : vector<1x1x128xf32> to vector<1x128xf32>
    %161 = vector.broadcast %160 : vector<1x128xf32> to vector<16x128xf32>
    %162 = arith.addf %158, %161 : vector<16x128xf32>
    %cst_63 = arith.constant 5.000000e-01 : f32
    %163 = vector.broadcast %cst_63 : f32 to vector<16x128xf32>
    %164 = arith.mulf %163, %162 : vector<16x128xf32>
    %cst_64 = arith.constant 4.471500e-02 : f32
    %165 = vector.broadcast %cst_64 : f32 to vector<16x128xf32>
    %166 = arith.mulf %165, %162 : vector<16x128xf32>
    %167 = arith.mulf %166, %162 : vector<16x128xf32>
    %168 = arith.mulf %167, %162 : vector<16x128xf32>
    %169 = arith.addf %162, %168 : vector<16x128xf32>
    %cst_65 = arith.constant 0.797884583 : f32
    %170 = vector.broadcast %cst_65 : f32 to vector<16x128xf32>
    %171 = arith.mulf %170, %169 : vector<16x128xf32>
    %172 = math.tanh %171 : vector<16x128xf32>
    %cst_66 = arith.constant 1.000000e+00 : f32
    %173 = vector.broadcast %cst_66 : f32 to vector<16x128xf32>
    %174 = arith.addf %173, %172 : vector<16x128xf32>
    %175 = arith.mulf %164, %174 : vector<16x128xf32>
    %176 = arith.truncf %175 : vector<16x128xf32> to vector<16x128xbf16>
    %c0_67 = arith.constant 0 : index
    %c0_68 = arith.constant 0 : index
    %c0_69 = arith.constant 0 : index
    %177 = vector.load %arg12[%c0_67, %c0_68, %c0_69] : memref<2x128x32xbf16, #tpu.memory_space<vmem>>, vector<1x128x32xbf16>
    %178 = vector.shape_cast %177 : vector<1x128x32xbf16> to vector<128x32xbf16>
    %cst_70 = arith.constant dense<0.000000e+00> : vector<16x32xf32>
    %179 = tpu.matmul %176, %178, %cst_70 {dimension_numbers = #tpu.dot_dimension_numbers<[1], [0], [0], [1], [0, 0, 1, 1], [], []>} : vector<16x128xbf16>, vector<128x32xbf16>, vector<16x32xf32> -> vector<16x32xf32>
    %c0_71 = arith.constant 0 : index
    %c0_72 = arith.constant 0 : index
    %c0_73 = arith.constant 0 : index
    %180 = vector.load %arg13[%c0_71, %c0_72, %c0_73] : memref<2x1x32xf32, #tpu.memory_space<vmem>>, vector<1x1x32xf32>
    %181 = vector.shape_cast %180 : vector<1x1x32xf32> to vector<1x32xf32>
    %182 = vector.broadcast %181 : vector<1x32xf32> to vector<16x32xf32>
    %183 = arith.addf %179, %182 : vector<16x32xf32>
    %184 = arith.addf %183, %154 : vector<16x32xf32>
    %c0_74 = arith.constant 0 : index
    %c0_75 = arith.constant 0 : index
    %c0_76 = arith.constant 0 : index
    %185 = vector.load %arg14[%c0_74, %c0_75, %c0_76] : memref<2x1x32xf32, #tpu.memory_space<vmem>>, vector<1x1x32xf32>
    %186 = vector.shape_cast %185 : vector<1x1x32xf32> to vector<1x32xf32>
    %c0_77 = arith.constant 0 : index
    %c0_78 = arith.constant 0 : index
    %c0_79 = arith.constant 0 : index
    %187 = vector.load %arg15[%c0_77, %c0_78, %c0_79] : memref<2x1x32xf32, #tpu.memory_space<vmem>>, vector<1x1x32xf32>
    %188 = vector.shape_cast %187 : vector<1x1x32xf32> to vector<1x32xf32>
    %cst_80 = arith.constant dense<0.000000e+00> : vector<16xf32>
    %189 = vector.multi_reduction <add>, %184, %cst_80 [1] : vector<16x32xf32> to vector<16xf32>
    %190 = vector.shape_cast %189 : vector<16xf32> to vector<16x1xf32>
    %cst_81 = arith.constant 3.200000e+01 : f32
    %191 = vector.broadcast %cst_81 : f32 to vector<16x1xf32>
    %192 = arith.divf %190, %191 : vector<16x1xf32>
    %193 = vector.broadcast %192 : vector<16x1xf32> to vector<16x32xf32>
    %194 = arith.subf %184, %193 : vector<16x32xf32>
    %195 = arith.mulf %194, %194 : vector<16x32xf32>
    %cst_82 = arith.constant dense<0.000000e+00> : vector<16xf32>
    %196 = vector.multi_reduction <add>, %195, %cst_82 [1] : vector<16x32xf32> to vector<16xf32>
    %197 = vector.shape_cast %196 : vector<16xf32> to vector<16x1xf32>
    %cst_83 = arith.constant 3.200000e+01 : f32
    %198 = vector.broadcast %cst_83 : f32 to vector<16x1xf32>
    %199 = arith.divf %197, %198 : vector<16x1xf32>
    %200 = vector.broadcast %192 : vector<16x1xf32> to vector<16x32xf32>
    %201 = arith.subf %184, %200 : vector<16x32xf32>
    %cst_84 = arith.constant 9.99999996E-13 : f32
    %202 = vector.broadcast %cst_84 : f32 to vector<16x1xf32>
    %203 = arith.addf %199, %202 : vector<16x1xf32>
    %204 = math.rsqrt %203 : vector<16x1xf32>
    %205 = vector.broadcast %204 : vector<16x1xf32> to vector<16x32xf32>
    %206 = arith.mulf %201, %205 : vector<16x32xf32>
    %207 = vector.broadcast %186 : vector<1x32xf32> to vector<16x32xf32>
    %208 = arith.mulf %206, %207 : vector<16x32xf32>
    %209 = vector.broadcast %188 : vector<1x32xf32> to vector<16x32xf32>
    %210 = arith.addf %208, %209 : vector<16x32xf32>
    %211 = arith.truncf %210 : vector<16x32xf32> to vector<16x32xbf16>
    %c1 = arith.constant 1 : index
    %c0_85 = arith.constant 0 : index
    %c0_86 = arith.constant 0 : index
    %212 = vector.load %arg4[%c1, %c0_85, %c0_86] : memref<2x32x96xbf16, #tpu.memory_space<vmem>>, vector<1x32x96xbf16>
    %213 = vector.shape_cast %212 : vector<1x32x96xbf16> to vector<32x96xbf16>
    %cst_87 = arith.constant dense<0.000000e+00> : vector<16x96xf32>
    %214 = tpu.matmul %211, %213, %cst_87 {dimension_numbers = #tpu.dot_dimension_numbers<[1], [0], [0], [1], [0, 0, 1, 1], [], []>} : vector<16x32xbf16>, vector<32x96xbf16>, vector<16x96xf32> -> vector<16x96xf32>
    %c1_88 = arith.constant 1 : index
    %c0_89 = arith.constant 0 : index
    %c0_90 = arith.constant 0 : index
    %215 = vector.load %arg5[%c1_88, %c0_89, %c0_90] : memref<2x1x96xf32, #tpu.memory_space<vmem>>, vector<1x1x96xf32>
    %216 = vector.shape_cast %215 : vector<1x1x96xf32> to vector<1x96xf32>
    %217 = vector.broadcast %216 : vector<1x96xf32> to vector<16x96xf32>
    %218 = arith.addf %214, %217 : vector<16x96xf32>
    %219 = arith.truncf %218 : vector<16x96xf32> to vector<16x96xbf16>
    %220 = vector.extract_strided_slice %219 {offsets = [0, 0], sizes = [8, 16], strides = [1, 1]} : vector<16x96xbf16> to vector<8x16xbf16>
    %221 = vector.extract_strided_slice %219 {offsets = [0, 32], sizes = [8, 16], strides = [1, 1]} : vector<16x96xbf16> to vector<8x16xbf16>
    %222 = vector.extract_strided_slice %219 {offsets = [0, 64], sizes = [8, 16], strides = [1, 1]} : vector<16x96xbf16> to vector<8x16xbf16>
    %cst_91 = arith.constant dense<0.000000e+00> : vector<8x8xf32>
    %223 = tpu.matmul %220, %221, %cst_91 {dimension_numbers = #tpu.dot_dimension_numbers<[1], [1], [0], [0], [0, 0, 1, 0], [], []>} : vector<8x16xbf16>, vector<8x16xbf16>, vector<8x8xf32> -> vector<8x8xf32>
    %224 = arith.addf %223, %8 : vector<8x8xf32>
    %cst_92 = arith.constant dense<0xFF800000> : vector<8xf32>
    %225 = vector.multi_reduction <maximumf>, %224, %cst_92 [1] : vector<8x8xf32> to vector<8xf32>
    %226 = vector.shape_cast %225 : vector<8xf32> to vector<8x1xf32>
    %227 = vector.broadcast %226 : vector<8x1xf32> to vector<8x8xf32>
    %228 = arith.subf %224, %227 : vector<8x8xf32>
    %229 = math.exp %228 : vector<8x8xf32>
    %cst_93 = arith.constant dense<0.000000e+00> : vector<8xf32>
    %230 = vector.multi_reduction <add>, %229, %cst_93 [1] : vector<8x8xf32> to vector<8xf32>
    %231 = vector.shape_cast %230 : vector<8xf32> to vector<8x1xf32>
    %232 = tpu.reciprocal %231 {approx = true} : vector<8x1xf32> -> vector<8x1xf32>
    %233 = vector.broadcast %232 : vector<8x1xf32> to vector<8x8xf32>
    %234 = arith.mulf %229, %233 : vector<8x8xf32>
    %235 = arith.truncf %234 : vector<8x8xf32> to vector<8x8xbf16>
    %cst_94 = arith.constant dense<0.000000e+00> : vector<8x16xf32>
    %236 = tpu.matmul %235, %222, %cst_94 {dimension_numbers = #tpu.dot_dimension_numbers<[1], [0], [0], [1], [0, 0, 1, 1], [], []>} : vector<8x8xbf16>, vector<8x16xbf16>, vector<8x16xf32> -> vector<8x16xf32>
    %237 = vector.extract_strided_slice %219 {offsets = [0, 16], sizes = [8, 16], strides = [1, 1]} : vector<16x96xbf16> to vector<8x16xbf16>
    %238 = vector.extract_strided_slice %219 {offsets = [0, 48], sizes = [8, 16], strides = [1, 1]} : vector<16x96xbf16> to vector<8x16xbf16>
    %239 = vector.extract_strided_slice %219 {offsets = [0, 80], sizes = [8, 16], strides = [1, 1]} : vector<16x96xbf16> to vector<8x16xbf16>
    %cst_95 = arith.constant dense<0.000000e+00> : vector<8x8xf32>
    %240 = tpu.matmul %237, %238, %cst_95 {dimension_numbers = #tpu.dot_dimension_numbers<[1], [1], [0], [0], [0, 0, 1, 0], [], []>} : vector<8x16xbf16>, vector<8x16xbf16>, vector<8x8xf32> -> vector<8x8xf32>
    %241 = arith.addf %240, %8 : vector<8x8xf32>
    %cst_96 = arith.constant dense<0xFF800000> : vector<8xf32>
    %242 = vector.multi_reduction <maximumf>, %241, %cst_96 [1] : vector<8x8xf32> to vector<8xf32>
    %243 = vector.shape_cast %242 : vector<8xf32> to vector<8x1xf32>
    %244 = vector.broadcast %243 : vector<8x1xf32> to vector<8x8xf32>
    %245 = arith.subf %241, %244 : vector<8x8xf32>
    %246 = math.exp %245 : vector<8x8xf32>
    %cst_97 = arith.constant dense<0.000000e+00> : vector<8xf32>
    %247 = vector.multi_reduction <add>, %246, %cst_97 [1] : vector<8x8xf32> to vector<8xf32>
    %248 = vector.shape_cast %247 : vector<8xf32> to vector<8x1xf32>
    %249 = tpu.reciprocal %248 {approx = true} : vector<8x1xf32> -> vector<8x1xf32>
    %250 = vector.broadcast %249 : vector<8x1xf32> to vector<8x8xf32>
    %251 = arith.mulf %246, %250 : vector<8x8xf32>
    %252 = arith.truncf %251 : vector<8x8xf32> to vector<8x8xbf16>
    %cst_98 = arith.constant dense<0.000000e+00> : vector<8x16xf32>
    %253 = tpu.matmul %252, %239, %cst_98 {dimension_numbers = #tpu.dot_dimension_numbers<[1], [0], [0], [1], [0, 0, 1, 1], [], []>} : vector<8x8xbf16>, vector<8x16xbf16>, vector<8x16xf32> -> vector<8x16xf32>
    %254 = tpu.concatenate %236, %253 in 1 : vector<8x16xf32>, vector<8x16xf32> -> vector<8x32xf32>
    %255 = vector.extract_strided_slice %219 {offsets = [8, 0], sizes = [8, 16], strides = [1, 1]} : vector<16x96xbf16> to vector<8x16xbf16>
    %256 = vector.extract_strided_slice %219 {offsets = [8, 32], sizes = [8, 16], strides = [1, 1]} : vector<16x96xbf16> to vector<8x16xbf16>
    %257 = vector.extract_strided_slice %219 {offsets = [8, 64], sizes = [8, 16], strides = [1, 1]} : vector<16x96xbf16> to vector<8x16xbf16>
    %cst_99 = arith.constant dense<0.000000e+00> : vector<8x8xf32>
    %258 = tpu.matmul %255, %256, %cst_99 {dimension_numbers = #tpu.dot_dimension_numbers<[1], [1], [0], [0], [0, 0, 1, 0], [], []>} : vector<8x16xbf16>, vector<8x16xbf16>, vector<8x8xf32> -> vector<8x8xf32>
    %259 = arith.addf %258, %15 : vector<8x8xf32>
    %cst_100 = arith.constant dense<0xFF800000> : vector<8xf32>
    %260 = vector.multi_reduction <maximumf>, %259, %cst_100 [1] : vector<8x8xf32> to vector<8xf32>
    %261 = vector.shape_cast %260 : vector<8xf32> to vector<8x1xf32>
    %262 = vector.broadcast %261 : vector<8x1xf32> to vector<8x8xf32>
    %263 = arith.subf %259, %262 : vector<8x8xf32>
    %264 = math.exp %263 : vector<8x8xf32>
    %cst_101 = arith.constant dense<0.000000e+00> : vector<8xf32>
    %265 = vector.multi_reduction <add>, %264, %cst_101 [1] : vector<8x8xf32> to vector<8xf32>
    %266 = vector.shape_cast %265 : vector<8xf32> to vector<8x1xf32>
    %267 = tpu.reciprocal %266 {approx = true} : vector<8x1xf32> -> vector<8x1xf32>
    %268 = vector.broadcast %267 : vector<8x1xf32> to vector<8x8xf32>
    %269 = arith.mulf %264, %268 : vector<8x8xf32>
    %270 = arith.truncf %269 : vector<8x8xf32> to vector<8x8xbf16>
    %cst_102 = arith.constant dense<0.000000e+00> : vector<8x16xf32>
    %271 = tpu.matmul %270, %257, %cst_102 {dimension_numbers = #tpu.dot_dimension_numbers<[1], [0], [0], [1], [0, 0, 1, 1], [], []>} : vector<8x8xbf16>, vector<8x16xbf16>, vector<8x16xf32> -> vector<8x16xf32>
    %272 = vector.extract_strided_slice %219 {offsets = [8, 16], sizes = [8, 16], strides = [1, 1]} : vector<16x96xbf16> to vector<8x16xbf16>
    %273 = vector.extract_strided_slice %219 {offsets = [8, 48], sizes = [8, 16], strides = [1, 1]} : vector<16x96xbf16> to vector<8x16xbf16>
    %274 = vector.extract_strided_slice %219 {offsets = [8, 80], sizes = [8, 16], strides = [1, 1]} : vector<16x96xbf16> to vector<8x16xbf16>
    %cst_103 = arith.constant dense<0.000000e+00> : vector<8x8xf32>
    %275 = tpu.matmul %272, %273, %cst_103 {dimension_numbers = #tpu.dot_dimension_numbers<[1], [1], [0], [0], [0, 0, 1, 0], [], []>} : vector<8x16xbf16>, vector<8x16xbf16>, vector<8x8xf32> -> vector<8x8xf32>
    %276 = arith.addf %275, %15 : vector<8x8xf32>
    %cst_104 = arith.constant dense<0xFF800000> : vector<8xf32>
    %277 = vector.multi_reduction <maximumf>, %276, %cst_104 [1] : vector<8x8xf32> to vector<8xf32>
    %278 = vector.shape_cast %277 : vector<8xf32> to vector<8x1xf32>
    %279 = vector.broadcast %278 : vector<8x1xf32> to vector<8x8xf32>
    %280 = arith.subf %276, %279 : vector<8x8xf32>
    %281 = math.exp %280 : vector<8x8xf32>
    %cst_105 = arith.constant dense<0.000000e+00> : vector<8xf32>
    %282 = vector.multi_reduction <add>, %281, %cst_105 [1] : vector<8x8xf32> to vector<8xf32>
    %283 = vector.shape_cast %282 : vector<8xf32> to vector<8x1xf32>
    %284 = tpu.reciprocal %283 {approx = true} : vector<8x1xf32> -> vector<8x1xf32>
    %285 = vector.broadcast %284 : vector<8x1xf32> to vector<8x8xf32>
    %286 = arith.mulf %281, %285 : vector<8x8xf32>
    %287 = arith.truncf %286 : vector<8x8xf32> to vector<8x8xbf16>
    %cst_106 = arith.constant dense<0.000000e+00> : vector<8x16xf32>
    %288 = tpu.matmul %287, %274, %cst_106 {dimension_numbers = #tpu.dot_dimension_numbers<[1], [0], [0], [1], [0, 0, 1, 1], [], []>} : vector<8x8xbf16>, vector<8x16xbf16>, vector<8x16xf32> -> vector<8x16xf32>
    %289 = tpu.concatenate %271, %288 in 1 : vector<8x16xf32>, vector<8x16xf32> -> vector<8x32xf32>
    %290 = tpu.concatenate %254, %289 in 0 : vector<8x32xf32>, vector<8x32xf32> -> vector<16x32xf32>
    %291 = arith.truncf %290 : vector<16x32xf32> to vector<16x32xbf16>
    %c1_107 = arith.constant 1 : index
    %c0_108 = arith.constant 0 : index
    %c0_109 = arith.constant 0 : index
    %292 = vector.load %arg6[%c1_107, %c0_108, %c0_109] : memref<2x32x32xbf16, #tpu.memory_space<vmem>>, vector<1x32x32xbf16>
    %293 = vector.shape_cast %292 : vector<1x32x32xbf16> to vector<32x32xbf16>
    %cst_110 = arith.constant dense<0.000000e+00> : vector<16x32xf32>
    %294 = tpu.matmul %291, %293, %cst_110 {dimension_numbers = #tpu.dot_dimension_numbers<[1], [0], [0], [1], [0, 0, 1, 1], [], []>} : vector<16x32xbf16>, vector<32x32xbf16>, vector<16x32xf32> -> vector<16x32xf32>
    %c1_111 = arith.constant 1 : index
    %c0_112 = arith.constant 0 : index
    %c0_113 = arith.constant 0 : index
    %295 = vector.load %arg7[%c1_111, %c0_112, %c0_113] : memref<2x1x32xf32, #tpu.memory_space<vmem>>, vector<1x1x32xf32>
    %296 = vector.shape_cast %295 : vector<1x1x32xf32> to vector<1x32xf32>
    %297 = vector.broadcast %296 : vector<1x32xf32> to vector<16x32xf32>
    %298 = arith.addf %294, %297 : vector<16x32xf32>
    %299 = arith.addf %298, %210 : vector<16x32xf32>
    %c1_114 = arith.constant 1 : index
    %c0_115 = arith.constant 0 : index
    %c0_116 = arith.constant 0 : index
    %300 = vector.load %arg8[%c1_114, %c0_115, %c0_116] : memref<2x1x32xf32, #tpu.memory_space<vmem>>, vector<1x1x32xf32>
    %301 = vector.shape_cast %300 : vector<1x1x32xf32> to vector<1x32xf32>
    %c1_117 = arith.constant 1 : index
    %c0_118 = arith.constant 0 : index
    %c0_119 = arith.constant 0 : index
    %302 = vector.load %arg9[%c1_117, %c0_118, %c0_119] : memref<2x1x32xf32, #tpu.memory_space<vmem>>, vector<1x1x32xf32>
    %303 = vector.shape_cast %302 : vector<1x1x32xf32> to vector<1x32xf32>
    %cst_120 = arith.constant dense<0.000000e+00> : vector<16xf32>
    %304 = vector.multi_reduction <add>, %299, %cst_120 [1] : vector<16x32xf32> to vector<16xf32>
    %305 = vector.shape_cast %304 : vector<16xf32> to vector<16x1xf32>
    %cst_121 = arith.constant 3.200000e+01 : f32
    %306 = vector.broadcast %cst_121 : f32 to vector<16x1xf32>
    %307 = arith.divf %305, %306 : vector<16x1xf32>
    %308 = vector.broadcast %307 : vector<16x1xf32> to vector<16x32xf32>
    %309 = arith.subf %299, %308 : vector<16x32xf32>
    %310 = arith.mulf %309, %309 : vector<16x32xf32>
    %cst_122 = arith.constant dense<0.000000e+00> : vector<16xf32>
    %311 = vector.multi_reduction <add>, %310, %cst_122 [1] : vector<16x32xf32> to vector<16xf32>
    %312 = vector.shape_cast %311 : vector<16xf32> to vector<16x1xf32>
    %cst_123 = arith.constant 3.200000e+01 : f32
    %313 = vector.broadcast %cst_123 : f32 to vector<16x1xf32>
    %314 = arith.divf %312, %313 : vector<16x1xf32>
    %315 = vector.broadcast %307 : vector<16x1xf32> to vector<16x32xf32>
    %316 = arith.subf %299, %315 : vector<16x32xf32>
    %cst_124 = arith.constant 9.99999996E-13 : f32
    %317 = vector.broadcast %cst_124 : f32 to vector<16x1xf32>
    %318 = arith.addf %314, %317 : vector<16x1xf32>
    %319 = math.rsqrt %318 : vector<16x1xf32>
    %320 = vector.broadcast %319 : vector<16x1xf32> to vector<16x32xf32>
    %321 = arith.mulf %316, %320 : vector<16x32xf32>
    %322 = vector.broadcast %301 : vector<1x32xf32> to vector<16x32xf32>
    %323 = arith.mulf %321, %322 : vector<16x32xf32>
    %324 = vector.broadcast %303 : vector<1x32xf32> to vector<16x32xf32>
    %325 = arith.addf %323, %324 : vector<16x32xf32>
    %326 = arith.truncf %325 : vector<16x32xf32> to vector<16x32xbf16>
    %c1_125 = arith.constant 1 : index
    %c0_126 = arith.constant 0 : index
    %c0_127 = arith.constant 0 : index
    %327 = vector.load %arg10[%c1_125, %c0_126, %c0_127] : memref<2x32x128xbf16, #tpu.memory_space<vmem>>, vector<1x32x128xbf16>
    %328 = vector.shape_cast %327 : vector<1x32x128xbf16> to vector<32x128xbf16>
    %cst_128 = arith.constant dense<0.000000e+00> : vector<16x128xf32>
    %329 = tpu.matmul %326, %328, %cst_128 {dimension_numbers = #tpu.dot_dimension_numbers<[1], [0], [0], [1], [0, 0, 1, 1], [], []>} : vector<16x32xbf16>, vector<32x128xbf16>, vector<16x128xf32> -> vector<16x128xf32>
    %c1_129 = arith.constant 1 : index
    %c0_130 = arith.constant 0 : index
    %c0_131 = arith.constant 0 : index
    %330 = vector.load %arg11[%c1_129, %c0_130, %c0_131] : memref<2x1x128xf32, #tpu.memory_space<vmem>>, vector<1x1x128xf32>
    %331 = vector.shape_cast %330 : vector<1x1x128xf32> to vector<1x128xf32>
    %332 = vector.broadcast %331 : vector<1x128xf32> to vector<16x128xf32>
    %333 = arith.addf %329, %332 : vector<16x128xf32>
    %cst_132 = arith.constant 5.000000e-01 : f32
    %334 = vector.broadcast %cst_132 : f32 to vector<16x128xf32>
    %335 = arith.mulf %334, %333 : vector<16x128xf32>
    %cst_133 = arith.constant 4.471500e-02 : f32
    %336 = vector.broadcast %cst_133 : f32 to vector<16x128xf32>
    %337 = arith.mulf %336, %333 : vector<16x128xf32>
    %338 = arith.mulf %337, %333 : vector<16x128xf32>
    %339 = arith.mulf %338, %333 : vector<16x128xf32>
    %340 = arith.addf %333, %339 : vector<16x128xf32>
    %cst_134 = arith.constant 0.797884583 : f32
    %341 = vector.broadcast %cst_134 : f32 to vector<16x128xf32>
    %342 = arith.mulf %341, %340 : vector<16x128xf32>
    %343 = math.tanh %342 : vector<16x128xf32>
    %cst_135 = arith.constant 1.000000e+00 : f32
    %344 = vector.broadcast %cst_135 : f32 to vector<16x128xf32>
    %345 = arith.addf %344, %343 : vector<16x128xf32>
    %346 = arith.mulf %335, %345 : vector<16x128xf32>
    %347 = arith.truncf %346 : vector<16x128xf32> to vector<16x128xbf16>
    %c1_136 = arith.constant 1 : index
    %c0_137 = arith.constant 0 : index
    %c0_138 = arith.constant 0 : index
    %348 = vector.load %arg12[%c1_136, %c0_137, %c0_138] : memref<2x128x32xbf16, #tpu.memory_space<vmem>>, vector<1x128x32xbf16>
    %349 = vector.shape_cast %348 : vector<1x128x32xbf16> to vector<128x32xbf16>
    %cst_139 = arith.constant dense<0.000000e+00> : vector<16x32xf32>
    %350 = tpu.matmul %347, %349, %cst_139 {dimension_numbers = #tpu.dot_dimension_numbers<[1], [0], [0], [1], [0, 0, 1, 1], [], []>} : vector<16x128xbf16>, vector<128x32xbf16>, vector<16x32xf32> -> vector<16x32xf32>
    %c1_140 = arith.constant 1 : index
    %c0_141 = arith.constant 0 : index
    %c0_142 = arith.constant 0 : index
    %351 = vector.load %arg13[%c1_140, %c0_141, %c0_142] : memref<2x1x32xf32, #tpu.memory_space<vmem>>, vector<1x1x32xf32>
    %352 = vector.shape_cast %351 : vector<1x1x32xf32> to vector<1x32xf32>
    %353 = vector.broadcast %352 : vector<1x32xf32> to vector<16x32xf32>
    %354 = arith.addf %350, %353 : vector<16x32xf32>
    %355 = arith.addf %354, %325 : vector<16x32xf32>
    %c1_143 = arith.constant 1 : index
    %c0_144 = arith.constant 0 : index
    %c0_145 = arith.constant 0 : index
    %356 = vector.load %arg14[%c1_143, %c0_144, %c0_145] : memref<2x1x32xf32, #tpu.memory_space<vmem>>, vector<1x1x32xf32>
    %357 = vector.shape_cast %356 : vector<1x1x32xf32> to vector<1x32xf32>
    %c1_146 = arith.constant 1 : index
    %c0_147 = arith.constant 0 : index
    %c0_148 = arith.constant 0 : index
    %358 = vector.load %arg15[%c1_146, %c0_147, %c0_148] : memref<2x1x32xf32, #tpu.memory_space<vmem>>, vector<1x1x32xf32>
    %359 = vector.shape_cast %358 : vector<1x1x32xf32> to vector<1x32xf32>
    %cst_149 = arith.constant dense<0.000000e+00> : vector<16xf32>
    %360 = vector.multi_reduction <add>, %355, %cst_149 [1] : vector<16x32xf32> to vector<16xf32>
    %361 = vector.shape_cast %360 : vector<16xf32> to vector<16x1xf32>
    %cst_150 = arith.constant 3.200000e+01 : f32
    %362 = vector.broadcast %cst_150 : f32 to vector<16x1xf32>
    %363 = arith.divf %361, %362 : vector<16x1xf32>
    %364 = vector.broadcast %363 : vector<16x1xf32> to vector<16x32xf32>
    %365 = arith.subf %355, %364 : vector<16x32xf32>
    %366 = arith.mulf %365, %365 : vector<16x32xf32>
    %cst_151 = arith.constant dense<0.000000e+00> : vector<16xf32>
    %367 = vector.multi_reduction <add>, %366, %cst_151 [1] : vector<16x32xf32> to vector<16xf32>
    %368 = vector.shape_cast %367 : vector<16xf32> to vector<16x1xf32>
    %cst_152 = arith.constant 3.200000e+01 : f32
    %369 = vector.broadcast %cst_152 : f32 to vector<16x1xf32>
    %370 = arith.divf %368, %369 : vector<16x1xf32>
    %371 = vector.broadcast %363 : vector<16x1xf32> to vector<16x32xf32>
    %372 = arith.subf %355, %371 : vector<16x32xf32>
    %cst_153 = arith.constant 9.99999996E-13 : f32
    %373 = vector.broadcast %cst_153 : f32 to vector<16x1xf32>
    %374 = arith.addf %370, %373 : vector<16x1xf32>
    %375 = math.rsqrt %374 : vector<16x1xf32>
    %376 = vector.broadcast %375 : vector<16x1xf32> to vector<16x32xf32>
    %377 = arith.mulf %372, %376 : vector<16x32xf32>
    %378 = vector.broadcast %357 : vector<1x32xf32> to vector<16x32xf32>
    %379 = arith.mulf %377, %378 : vector<16x32xf32>
    %380 = vector.broadcast %359 : vector<1x32xf32> to vector<16x32xf32>
    %381 = arith.addf %379, %380 : vector<16x32xf32>
    %382 = vector.extract_strided_slice %381 {offsets = [0, 0], sizes = [1, 32], strides = [1, 1]} : vector<16x32xf32> to vector<1x32xf32>
    %383 = vector.extract_strided_slice %381 {offsets = [8, 0], sizes = [1, 32], strides = [1, 1]} : vector<16x32xf32> to vector<1x32xf32>
    %384 = tpu.concatenate %382, %383 in 0 : vector<1x32xf32>, vector<1x32xf32> -> vector<2x32xf32>
    %385 = arith.truncf %384 : vector<2x32xf32> to vector<2x32xbf16>
    %c0_154 = arith.constant 0 : index
    %c0_155 = arith.constant 0 : index
    %386 = vector.load %arg16[%c0_154, %c0_155] : memref<32x32xbf16, #tpu.memory_space<vmem>>, vector<32x32xbf16>
    %cst_156 = arith.constant dense<0.000000e+00> : vector<2x32xf32>
    %387 = tpu.matmul %385, %386, %cst_156 {dimension_numbers = #tpu.dot_dimension_numbers<[1], [0], [0], [1], [0, 0, 1, 1], [], []>} : vector<2x32xbf16>, vector<32x32xbf16>, vector<2x32xf32> -> vector<2x32xf32>
    %c0_157 = arith.constant 0 : index
    %c0_158 = arith.constant 0 : index
    %388 = vector.load %arg17[%c0_157, %c0_158] : memref<1x32xf32, #tpu.memory_space<vmem>>, vector<1x32xf32>
    %389 = vector.broadcast %388 : vector<1x32xf32> to vector<2x32xf32>
    %390 = arith.addf %387, %389 : vector<2x32xf32>
    %391 = math.tanh %390 : vector<2x32xf32>
    %392 = arith.truncf %391 : vector<2x32xf32> to vector<2x32xbf16>
    %c0_159 = arith.constant 0 : index
    %c0_160 = arith.constant 0 : index
    %393 = vector.load %arg18[%c0_159, %c0_160] : memref<32x128xbf16, #tpu.memory_space<vmem>>, vector<32x128xbf16>
    %cst_161 = arith.constant dense<0.000000e+00> : vector<2x128xf32>
    %394 = tpu.matmul %392, %393, %cst_161 {dimension_numbers = #tpu.dot_dimension_numbers<[1], [0], [0], [1], [0, 0, 1, 1], [], []>} : vector<2x32xbf16>, vector<32x128xbf16>, vector<2x128xf32> -> vector<2x128xf32>
    %c0_162 = arith.constant 0 : index
    %c0_163 = arith.constant 0 : index
    %395 = vector.load %arg19[%c0_162, %c0_163] : memref<1x128xf32, #tpu.memory_space<vmem>>, vector<1x128xf32>
    %396 = vector.broadcast %395 : vector<1x128xf32> to vector<2x128xf32>
    %397 = arith.addf %394, %396 : vector<2x128xf32>
    %c0_164 = arith.constant 0 : index
    %c0_165 = arith.constant 0 : index
    %398 = vector.load %arg20[%c0_164, %c0_165] : memref<2x128xf32, #tpu.memory_space<vmem>>, vector<2x128xf32>
    tpu.vector_store %arg20[%c0_164, %c0_165], %397 {strides = array<i32>} : memref<2x128xf32, #tpu.memory_space<vmem>>, vector<2x128xf32>,
    return
  }
}

</mosaic_0001>

<llo_original>
// kernel: tpu_custom_call.1
$region0: #{tpu_custom_call.1}
  #allocation0 [shape = 'u32[]', space=smem, size = 0x4, offset = 0x4, fixed_abs, tag = 'smem constant byte address 0x4 - core index']
  #allocation1 [shape = 'u32[72,128]{1,0:T(1,128)}', space=vmem, size = 0x9000, scoped, tag = 'internal scratch']
  %s0 = inlined_call_operand.vmem [shape: f32[16,32], index: 0, kind: input, shape index: {}]
  %s1 = inlined_call_operand.vmem [shape: f32[2,8], index: 1, kind: input, shape index: {}]
  %s2 = inlined_call_operand.vmem [shape: f32[1,32], index: 2, kind: input, shape index: {}]
  %s3 = inlined_call_operand.hbm [shape: f32[1,32], index: 3, kind: input, shape index: {}]
  %s4 = inlined_call_operand.vmem [shape: bf16[2,32,96], index: 4, kind: input, shape index: {}]
  %s5 = inlined_call_operand.vmem [shape: f32[2,1,96], index: 5, kind: input, shape index: {}]
  %s6 = inlined_call_operand.vmem [shape: bf16[2,32,32], index: 6, kind: input, shape index: {}]
  %s7 = inlined_call_operand.vmem [shape: f32[2,1,32], index: 7, kind: input, shape index: {}]
  %s8 = inlined_call_operand.vmem [shape: f32[2,1,32], index: 8, kind: input, shape index: {}]
  %s9 = inlined_call_operand.vmem [shape: f32[2,1,32], index: 9, kind: input, shape index: {}]
  %s10 = inlined_call_operand.vmem [shape: bf16[2,32,128], index: 10, kind: input, shape index: {}]
  %s11 = inlined_call_operand.vmem [shape: f32[2,1,128], index: 11, kind: input, shape index: {}]
  %s12 = inlined_call_operand.vmem [shape: bf16[2,128,32], index: 12, kind: input, shape index: {}]
  %s13 = inlined_call_operand.vmem [shape: f32[2,1,32], index: 13, kind: input, shape index: {}]
  %s14 = inlined_call_operand.vmem [shape: f32[2,1,32], index: 14, kind: input, shape index: {}]
  %s15 = inlined_call_operand.vmem [shape: f32[2,1,32], index: 15, kind: input, shape index: {}]
  %s16 = inlined_call_operand.vmem [shape: bf16[32,32], index: 16, kind: input, shape index: {}]
  %s17 = inlined_call_operand.vmem [shape: f32[1,32], index: 17, kind: input, shape index: {}]
  %s18 = inlined_call_operand.vmem [shape: bf16[32,128], index: 18, kind: input, shape index: {}]
  %s19 = inlined_call_operand.vmem [shape: f32[1,128], index: 19, kind: input, shape index: {}]
  %s20 = inlined_call_operand.hbm [shape: f32[2,128], index: 20, kind: output, shape index: {}]
  %s21 = sld [smem:[#allocation0]]
  $region94: #{tpu_custom_call.1} parent=0
    _
  %s23 = ssub.s32 1, %s21
  %s24 = scalar_select 0, %s23, %s21
  $region1: #{tpu_custom_call.1} parent=0
    #allocation2 [shape = 'u8[512]{0}', space=vmem, size = 0x400, scoped, tag = 'input window, operand 3, single buffered']
    #allocation3 [shape = 's32[1]{0}', space=sflag, size = 0x4, scoped, tag = 'scoped memory for tpu_custom_call.1']
    #allocation4 [shape = 's32[1]{0}', space=sflag, size = 0x4, scoped, tag = 'scoped memory for tpu_custom_call.1']
    #allocation5 [shape = 'u8[1024]{0}', space=vmem, size = 0x400, scoped, tag = 'output window, operand 0, single buffered']
    %25 = vsyncpa [#allocation3], 0
    %26 = vsyncpa [#allocation4], 0
    // Predicated region
    $region2: #{tpu_custom_call.1} parent=1 // pred_check
      _
    $region3: #{tpu_custom_call.1} parent=1 // pred_check_branch
      %28 = sbr.rel (0) target = $region5
    $region4: #{tpu_custom_call.1} parent=1 // pred_region
      _
    $region5: #{tpu_custom_call.1} parent=1 // pred_fallthru
      _
    // Predicated region
    $region6: #{tpu_custom_call.1} parent=1 // pred_check
      _
    $region7: #{tpu_custom_call.1} parent=1 // pred_check_branch
      %30 = sbr.rel (0) target = $region9
    $region8: #{tpu_custom_call.1} parent=1 // pred_region
      _
    $region9: #{tpu_custom_call.1} parent=1 // pred_fallthru
      _
    // Predicated region
    $region10: #{tpu_custom_call.1} parent=1 // pred_check
      _
    $region11: #{tpu_custom_call.1} parent=1 // pred_check_branch
      %32 = sbr.rel (0) target = $region13
    $region12: #{tpu_custom_call.1} parent=1 // pred_region
      _
    $region13: #{tpu_custom_call.1} parent=1 // pred_fallthru
      _
    // Predicated region
    $region14: #{tpu_custom_call.1} parent=1 // pred_check
      _
    $region15: #{tpu_custom_call.1} parent=1 // pred_check_branch
      %34 = sbr.rel (0) target = $region17
    $region16: #{tpu_custom_call.1} parent=1 // pred_region
      %36 = vsyncadd [#allocation3], 0
      %s38 = sshll.u32 %s3, 4
      %s39 = int_to_ptr.hbm [resolvable:$true] %s38
      %s40 = sshll.u32 [#allocation2], 4
      %s41 = int_to_ptr.vmem [resolvable:$true] %s40
      %43 = dma.hbm_to_vmem [thread:$0]  %s39, 16, %s41, [#allocation3]
    $region17: #{tpu_custom_call.1} parent=1 // pred_fallthru
      _
    // Predicated region
    $region18: #{tpu_custom_call.1} parent=1 // pred_check
      _
    $region19: #{tpu_custom_call.1} parent=1 // pred_check_branch
      %45 = sbr.rel (0) target = $region21
    $region20: #{tpu_custom_call.1} parent=1 // pred_region
      _
    $region21: #{tpu_custom_call.1} parent=1 // pred_fallthru
      _
    // Predicated region
    $region22: #{tpu_custom_call.1} parent=1 // pred_check
      _
    $region23: #{tpu_custom_call.1} parent=1 // pred_check_branch
      %47 = sbr.rel (0) target = $region25
    $region24: #{tpu_custom_call.1} parent=1 // pred_region
      _
    $region25: #{tpu_custom_call.1} parent=1 // pred_fallthru
      _
    // Predicated region
    $region26: #{tpu_custom_call.1} parent=1 // pred_check
      _
    $region27: #{tpu_custom_call.1} parent=1 // pred_check_branch
      %49 = sbr.rel (0) target = $region29
    $region28: #{tpu_custom_call.1} parent=1 // pred_region
      _
    $region29: #{tpu_custom_call.1} parent=1 // pred_fallthru
      _
    // Predicated region
    $region30: #{tpu_custom_call.1} parent=1 // pred_check
      _
    $region31: #{tpu_custom_call.1} parent=1 // pred_check_branch
      %51 = sbr.rel (0) target = $region33
    $region32: #{tpu_custom_call.1} parent=1 // pred_region
      _
    $region33: #{tpu_custom_call.1} parent=1 // pred_fallthru
      _
    // Predicated region
    $region34: #{tpu_custom_call.1} parent=1 // pred_check
      _
    $region35: #{tpu_custom_call.1} parent=1 // pred_check_branch
      %53 = sbr.rel (0) target = $region37
    $region36: #{tpu_custom_call.1} parent=1 // pred_region
      _
    $region37: #{tpu_custom_call.1} parent=1 // pred_fallthru
      _
    // Predicated region
    $region38: #{tpu_custom_call.1} parent=1 // pred_check
      _
    $region39: #{tpu_custom_call.1} parent=1 // pred_check_branch
      %55 = sbr.rel (0) target = $region41
    $region40: #{tpu_custom_call.1} parent=1 // pred_region
      _
    $region41: #{tpu_custom_call.1} parent=1 // pred_fallthru
      _
    // Predicated region
    $region42: #{tpu_custom_call.1} parent=1 // pred_check
      _
    $region43: #{tpu_custom_call.1} parent=1 // pred_check_branch
      %57 = sbr.rel (0) target = $region45
    $region44: #{tpu_custom_call.1} parent=1 // pred_region
      _
    $region45: #{tpu_custom_call.1} parent=1 // pred_fallthru
      _
    // Predicated region
    $region46: #{tpu_custom_call.1} parent=1 // pred_check
      _
    $region47: #{tpu_custom_call.1} parent=1 // pred_check_branch
      %59 = sbr.rel (0) target = $region49
    $region48: #{tpu_custom_call.1} parent=1 // pred_region
      _
    $region49: #{tpu_custom_call.1} parent=1 // pred_fallthru
      _
    // Predicated region
    $region50: #{tpu_custom_call.1} parent=1 // pred_check
      _
    $region51: #{tpu_custom_call.1} parent=1 // pred_check_branch
      %61 = sbr.rel (0) target = $region53
    $region52: #{tpu_custom_call.1} parent=1 // pred_region
      _
    $region53: #{tpu_custom_call.1} parent=1 // pred_fallthru
      _
    // Predicated region
    $region54: #{tpu_custom_call.1} parent=1 // pred_check
      _
    $region55: #{tpu_custom_call.1} parent=1 // pred_check_branch
      %63 = sbr.rel (0) target = $region57
    $region56: #{tpu_custom_call.1} parent=1 // pred_region
      _
    $region57: #{tpu_custom_call.1} parent=1 // pred_fallthru
      _
    // Predicated region
    $region58: #{tpu_custom_call.1} parent=1 // pred_check
      _
    $region59: #{tpu_custom_call.1} parent=1 // pred_check_branch
      %65 = sbr.rel (0) target = $region61
    $region60: #{tpu_custom_call.1} parent=1 // pred_region
      _
    $region61: #{tpu_custom_call.1} parent=1 // pred_fallthru
      _
    // Predicated region
    $region62: #{tpu_custom_call.1} parent=1 // pred_check
      _
    $region63: #{tpu_custom_call.1} parent=1 // pred_check_branch
      %67 = sbr.rel (0) target = $region65
    $region64: #{tpu_custom_call.1} parent=1 // pred_region
      _
    $region65: #{tpu_custom_call.1} parent=1 // pred_fallthru
      _
    // Predicated region
    $region66: #{tpu_custom_call.1} parent=1 // pred_check
      _
    $region67: #{tpu_custom_call.1} parent=1 // pred_check_branch
      %69 = sbr.rel (0) target = $region69
    $region68: #{tpu_custom_call.1} parent=1 // pred_region
      _
    $region69: #{tpu_custom_call.1} parent=1 // pred_fallthru
      _
    // Predicated region
    $region70: #{tpu_custom_call.1} parent=1 // pred_check
      _
    $region71: #{tpu_custom_call.1} parent=1 // pred_check_branch
      %71 = sbr.rel (0) target = $region73
    $region72: #{tpu_custom_call.1} parent=1 // pred_region
      _
    $region73: #{tpu_custom_call.1} parent=1 // pred_fallthru
      _
    // Predicated region
    $region74: #{tpu_custom_call.1} parent=1 // pred_check
      _
    $region75: #{tpu_custom_call.1} parent=1 // pred_check_branch
      %73 = sbr.rel (0) target = $region77
    $region76: #{tpu_custom_call.1} parent=1 // pred_region
      _
    $region77: #{tpu_custom_call.1} parent=1 // pred_fallthru
      _
    // Predicated region
    $region78: #{tpu_custom_call.1} parent=1 // pred_check
      _
    $region79: #{tpu_custom_call.1} parent=1 // pred_check_branch
      %75 = sbr.rel (0) target = $region81
    $region80: #{tpu_custom_call.1} parent=1 // pred_region
      _
    $region81: #{tpu_custom_call.1} parent=1 // pred_fallthru
      _
    // Predicated region
    $region82: #{tpu_custom_call.1} parent=1 // pred_check
      _
    $region83: #{tpu_custom_call.1} parent=1 // pred_check_branch
      %77 = sbr.rel (0) target = $region85
    $region84: #{tpu_custom_call.1} parent=1 // pred_region
      %79 = dma.done [#allocation3], 16
    $region85: #{tpu_custom_call.1} parent=1 // pred_fallthru
      _
    %v81 = vld [vmem:[%s0] sm:$0xff]
    %v82 = vld [vmem:[%s0 + $0x8] sm:$0xff]
    %v83 = vld [vmem:[%s1] sm:$0x3]
    %v84 = vsub.f32 %v83, 1.0
    %v85 = vmul.f32 %v84, 10000.0
    %v86 = vperm.slane %v85, 0
    %v87 = vperm.slane %v85, 1
    %v88 = vld [vmem:[%s2] sm:$0x1]
    %v89 = vld [vmem:[#allocation2] sm:$0x1]
    %vm90 = vcmask 261120
    %v91 = vsel %vm90, %v81, 0.0
    %92 = vadd.xlane.f32.xlu0 %v91
    %v93 = vpop.xlane.xlu0 %92
    %v94 = vsel %vm90, %v82, 0.0
    %95 = vadd.xlane.f32.xlu0 %v94
    %v96 = vpop.xlane.xlu0 %95
    %v97 = vrcp.pop 32.0
    %v98 = vmul.f32 32.0, %v97
    %v99 = vsub.f32 1.0, %v98
    %v100 = vmul.f32 %v97, %v99
    %v101 = vadd.f32 %v97, %v100
    %vm102 = vweird.f32 %v97
    %v103 = vsel %vm102, %v97, %v101
    %v104 = vmul.f32 %v93, %v103
    %v105 = vmul.f32 %v96, %v103
    %v106 = vsub.f32 %v81, %v104
    %v107 = vsub.f32 %v82, %v105
    %v108 = vmul.f32 %v106, %v106
    %v109 = vmul.f32 %v107, %v107
    %v110 = vsel %vm90, %v108, 0.0
    %111 = vadd.xlane.f32.xlu0 %v110
    %v112 = vpop.xlane.xlu0 %111
    %v113 = vsel %vm90, %v109, 0.0
    %114 = vadd.xlane.f32.xlu0 %v113
    %v115 = vpop.xlane.xlu0 %114
    %v116 = vmul.f32 %v112, %v103
    %v117 = vmul.f32 %v115, %v103
    %v118 = vadd.f32 %v116, 1e-12
    %v119 = vadd.f32 %v117, 1e-12
    %v120 = vrsqrt.pop %v118
    %v121 = vmul.f32 %v120, %v118
    %v122 = vmul.f32 %v121, %v120
    %v123 = vmul.f32 0.5, %v122
    %v124 = vsub.f32 1.5, %v123
    %v125 = vmul.f32 %v120, %v124
    %vm126 = vweird.f32 %v118
    %vm127 = vweird.f32 %v120
    %vm128 = vmor %vm126, %vm127
    %v129 = vsel %vm128, %v120, %v125
    %v130 = vrsqrt.pop %v119
    %v131 = vmul.f32 %v130, %v119
    %v132 = vmul.f32 %v131, %v130
    %v133 = vmul.f32 0.5, %v132
    %v134 = vsub.f32 1.5, %v133
    %v135 = vmul.f32 %v130, %v134
    %vm136 = vweird.f32 %v119
    %vm137 = vweird.f32 %v130
    %vm138 = vmor %vm136, %vm137
    %v139 = vsel %vm138, %v130, %v135
    %v140 = vmul.f32 %v106, %v129
    %v141 = vmul.f32 %v107, %v139
    %v143 = vperm.slane %v88, 0
    %v145 = vmul.f32 %v140, %v143
    %v146 = vmul.f32 %v141, %v143
    %v148 = vperm.slane %v89, 0
    %v150 = vadd.f32 %v145, %v148
    %v151 = vadd.f32 %v146, %v148
    %v152 = vpack.c.bf16 %v151, %v150
    %v153 = vld [vmem:[%s4] sm:$0xf]
    %v154 = vld [vmem:[%s4 + $0x4] sm:$0xf]
    %v155 = vld [vmem:[%s4 + $0x8] sm:$0xf]
    %v156 = vld [vmem:[%s4 + $0xc] sm:$0xf]
    %v157 = vld [vmem:[%s5] sm:$0x1]
    %v159 = vperm.slane %v157, 0
    %v165 = vunpack.c.l.b16 %v153
    %v166 = vunpack.c.l.b16 %v154
    %v167 = vunpack.c.l.b16 %v155
    %v168 = vunpack.c.l.b16 %v156
    %v169 = vpack.c.b16 %v166, %v165
    %v170 = vpack.c.b16 %v168, %v167
    %v174 = vsel %vm90, %v152, 0
    %176 = vmatpush.bf16.msra.mxu0 0
    %177 = vmatpush.bf16.msra.mxu0 0
    %178 = vmatpush.bf16.msra.mxu0 0
    %179 = vmatpush.bf16.msra.mxu0 0
    %180 = vmatpush.bf16.msra.mxu0 0
    %181 = vmatpush.bf16.msra.mxu0 0
    %182 = vmatpush.bf16.msra.mxu0 %v170
    %183 = vmatpush.bf16.msra.mxu0 %v169
    %184 = vmatmul.bf16.gmra.mxu0 %v174
    %v185 = vpop.f32.mrf.mxu0
    %v186 = vadd.f32 %v159, %v185
    %v187 = vpop.f32.mrf.mxu0
    %v188 = vadd.f32 %v159, %v187
    %189 = vdwg.mxu0
    %v190 = vpack.c.bf16 %v186, %v186
    %v191 = vpack.c.bf16 %v188, %v188
    %v193 = vunpack.c.l.b16 %v190
    %v194 = vpack.c.b16 %v193, %v193
    %195 = vrot.lane.b32.xlu0 %v194, 96
    %v196 = vpop.permute.xlu0 %195
    %vm197 = vcmask 130048
    %v199 = vsel %vm197, %v190, 0
    %v202 = vsel %vm197, %v196, 0
    %204 = vmatpush.bf16.xpose.msra.mxu0 0
    %205 = vmatpush.bf16.xpose.msra.mxu0 0
    %206 = vmatpush.bf16.xpose.msra.mxu0 0
    %207 = vmatpush.bf16.xpose.msra.mxu0 0
    %208 = vmatpush.bf16.xpose.msra.mxu0 0
    %209 = vmatpush.bf16.xpose.msra.mxu0 0
    %210 = vmatpush.bf16.xpose.msra.mxu0 0
    %211 = vmatpush.bf16.xpose.msra.mxu0 %v202
    %212 = vmatmul.bf16.gmra.mxu0 %v199
    %v213 = vpop.f32.mrf.mxu0
    %v214 = vadd.f32 %v86, %v213
    %v215 = vpop.f32.mrf.mxu0
    %216 = vdwg.mxu0
    %vm217 = vcmask 64512
    %v218 = vsel %vm217, %v214, -inf
    %219 = vmax.xlane.f32.xlu0 %v218
    %v220 = vpop.xlane.xlu0 %219
    %v221 = vsub.f32 %v214, %v220
    %v222 = vmul.f32 %v221, 1.442695
    %v223 = vpow.pop %v222
    %v224 = vsel %vm217, %v223, 0.0
    %225 = vadd.xlane.f32.xlu0 %v224
    %v226 = vpop.xlane.xlu0 %225
    %v227 = vrcp.pop %v226
    %v228 = vmul.f32 %v223, %v227
    %v229 = vpack.c.bf16 %v228, %v228
    %230 = vrot.lane.b32.xlu0 %v194, 64
    %v231 = vpop.permute.xlu0 %230
    %v233 = vsel %vm217, %v229, 0
    %vm235 = vcmask 1043456
    %v237 = vsel %vm235, %v231, 0
    %239 = vmatpush.bf16.msra.mxu0 0
    %240 = vmatpush.bf16.msra.mxu0 0
    %241 = vmatpush.bf16.msra.mxu0 0
    %242 = vmatpush.bf16.msra.mxu0 0
    %243 = vmatpush.bf16.msra.mxu0 0
    %244 = vmatpush.bf16.msra.mxu0 0
    %245 = vmatpush.bf16.msra.mxu0 0
    %246 = vmatpush.bf16.msra.mxu0 %v237
    %247 = vmatmul.bf16.gmra.mxu0 %v233
    %v248 = vpop.f32.mrf.mxu0
    %v249 = vadd.f32 0.0, %v248
    %v250 = vpop.f32.mrf.mxu0
    %251 = vdwg.mxu0
    %252 = vrot.lane.b32.xlu0 %v194, 112
    %v253 = vpop.permute.xlu0 %252
    %254 = vrot.lane.b32.xlu0 %v194, 80
    %v255 = vpop.permute.xlu0 %254
    %v257 = vsel %vm197, %v253, 0
    %v260 = vsel %vm197, %v255, 0
    %262 = vmatpush.bf16.xpose.msra.mxu0 0
    %263 = vmatpush.bf16.xpose.msra.mxu0 0
    %264 = vmatpush.bf16.xpose.msra.mxu0 0
    %265 = vmatpush.bf16.xpose.msra.mxu0 0
    %266 = vmatpush.bf16.xpose.msra.mxu0 0
    %267 = vmatpush.bf16.xpose.msra.mxu0 0
    %268 = vmatpush.bf16.xpose.msra.mxu0 0
    %269 = vmatpush.bf16.xpose.msra.mxu0 %v260
    %270 = vmatmul.bf16.gmra.mxu0 %v257
    %v271 = vpop.f32.mrf.mxu0
    %v272 = vadd.f32 %v86, %v271
    %v273 = vpop.f32.mrf.mxu0
    %274 = vdwg.mxu0
    %v275 = vsel %vm217, %v272, -inf
    %276 = vmax.xlane.f32.xlu0 %v275
    %v277 = vpop.xlane.xlu0 %276
    %v278 = vsub.f32 %v272, %v277
    %v279 = vmul.f32 %v278, 1.442695
    %v280 = vpow.pop %v279
    %v281 = vsel %vm217, %v280, 0.0
    %282 = vadd.xlane.f32.xlu0 %v281
    %v283 = vpop.xlane.xlu0 %282
    %v284 = vrcp.pop %v283
    %v285 = vmul.f32 %v280, %v284
    %v286 = vpack.c.bf16 %v285, %v285
    %287 = vrot.lane.b32.xlu0 %v194, 48
    %v288 = vpop.permute.xlu0 %287
    %v290 = vsel %vm217, %v286, 0
    %v293 = vsel %vm235, %v288, 0
    %295 = vmatpush.bf16.msra.mxu0 0
    %296 = vmatpush.bf16.msra.mxu0 0
    %297 = vmatpush.bf16.msra.mxu0 0
    %298 = vmatpush.bf16.msra.mxu0 0
    %299 = vmatpush.bf16.msra.mxu0 0
    %300 = vmatpush.bf16.msra.mxu0 0
    %301 = vmatpush.bf16.msra.mxu0 0
    %302 = vmatpush.bf16.msra.mxu0 %v293
    %303 = vmatmul.bf16.gmra.mxu0 %v290
    %v304 = vpop.f32.mrf.mxu0
    %v305 = vadd.f32 0.0, %v304
    %v306 = vpop.f32.mrf.mxu0
    %307 = vdwg.mxu0
    %309 = vrot.lane.b32.xlu0 %v305, 16
    %v310 = vpop.permute.xlu0 %309
    %v312 = vsel %vm197, %v249, %v310
    %v314 = vunpack.c.l.b16 %v191
    %v315 = vpack.c.b16 %v314, %v314
    %316 = vrot.lane.b32.xlu0 %v315, 96
    %v317 = vpop.permute.xlu0 %316
    %v319 = vsel %vm197, %v191, 0
    %v322 = vsel %vm197, %v317, 0
    %324 = vmatpush.bf16.xpose.msra.mxu0 0
    %325 = vmatpush.bf16.xpose.msra.mxu0 0
    %326 = vmatpush.bf16.xpose.msra.mxu0 0
    %327 = vmatpush.bf16.xpose.msra.mxu0 0
    %328 = vmatpush.bf16.xpose.msra.mxu0 0
    %329 = vmatpush.bf16.xpose.msra.mxu0 0
    %330 = vmatpush.bf16.xpose.msra.mxu0 0
    %331 = vmatpush.bf16.xpose.msra.mxu0 %v322
    %332 = vmatmul.bf16.gmra.mxu0 %v319
    %v333 = vpop.f32.mrf.mxu0
    %v334 = vadd.f32 %v87, %v333
    %v335 = vpop.f32.mrf.mxu0
    %336 = vdwg.mxu0
    %v337 = vsel %vm217, %v334, -inf
    %338 = vmax.xlane.f32.xlu0 %v337
    %v339 = vpop.xlane.xlu0 %338
    %v340 = vsub.f32 %v334, %v339
    %v341 = vmul.f32 %v340, 1.442695
    %v342 = vpow.pop %v341
    %v343 = vsel %vm217, %v342, 0.0
    %344 = vadd.xlane.f32.xlu0 %v343
    %v345 = vpop.xlane.xlu0 %344
    %v346 = vrcp.pop %v345
    %v347 = vmul.f32 %v342, %v346
    %v348 = vpack.c.bf16 %v347, %v347
    %349 = vrot.lane.b32.xlu0 %v315, 64
    %v350 = vpop.permute.xlu0 %349
    %v352 = vsel %vm217, %v348, 0
    %v355 = vsel %vm235, %v350, 0
    %357 = vmatpush.bf16.msra.mxu0 0
    %358 = vmatpush.bf16.msra.mxu0 0
    %359 = vmatpush.bf16.msra.mxu0 0
    %360 = vmatpush.bf16.msra.mxu0 0
    %361 = vmatpush.bf16.msra.mxu0 0
    %362 = vmatpush.bf16.msra.mxu0 0
    %363 = vmatpush.bf16.msra.mxu0 0
    %364 = vmatpush.bf16.msra.mxu0 %v355
    %365 = vmatmul.bf16.gmra.mxu0 %v352
    %v366 = vpop.f32.mrf.mxu0
    %v367 = vadd.f32 0.0, %v366
    %v368 = vpop.f32.mrf.mxu0
    %369 = vdwg.mxu0
    %370 = vrot.lane.b32.xlu0 %v315, 112
    %v371 = vpop.permute.xlu0 %370
    %372 = vrot.lane.b32.xlu0 %v315, 80
    %v373 = vpop.permute.xlu0 %372
    %v375 = vsel %vm197, %v371, 0
    %v378 = vsel %vm197, %v373, 0
    %380 = vmatpush.bf16.xpose.msra.mxu0 0
    %381 = vmatpush.bf16.xpose.msra.mxu0 0
    %382 = vmatpush.bf16.xpose.msra.mxu0 0
    %383 = vmatpush.bf16.xpose.msra.mxu0 0
    %384 = vmatpush.bf16.xpose.msra.mxu0 0
    %385 = vmatpush.bf16.xpose.msra.mxu0 0
    %386 = vmatpush.bf16.xpose.msra.mxu0 0
    %387 = vmatpush.bf16.xpose.msra.mxu0 %v378
    %388 = vmatmul.bf16.gmra.mxu0 %v375
    %v389 = vpop.f32.mrf.mxu0
    %v390 = vadd.f32 %v87, %v389
    %v391 = vpop.f32.mrf.mxu0
    %392 = vdwg.mxu0
    %v393 = vsel %vm217, %v390, -inf
    %394 = vmax.xlane.f32.xlu0 %v393
    %v395 = vpop.xlane.xlu0 %394
    %v396 = vsub.f32 %v390, %v395
    %v397 = vmul.f32 %v396, 1.442695
    %v398 = vpow.pop %v397
    %v399 = vsel %vm217, %v398, 0.0
    %400 = vadd.xlane.f32.xlu0 %v399
    %v401 = vpop.xlane.xlu0 %400
    %v402 = vrcp.pop %v401
    %v403 = vmul.f32 %v398, %v402
    %v404 = vpack.c.bf16 %v403, %v403
    %405 = vrot.lane.b32.xlu0 %v315, 48
    %v406 = vpop.permute.xlu0 %405
    %v408 = vsel %vm217, %v404, 0
    %v411 = vsel %vm235, %v406, 0
    %413 = vmatpush.bf16.msra.mxu0 0
    %414 = vmatpush.bf16.msra.mxu0 0
    %415 = vmatpush.bf16.msra.mxu0 0
    %416 = vmatpush.bf16.msra.mxu0 0
    %417 = vmatpush.bf16.msra.mxu0 0
    %418 = vmatpush.bf16.msra.mxu0 0
    %419 = vmatpush.bf16.msra.mxu0 0
    %420 = vmatpush.bf16.msra.mxu0 %v411
    %421 = vmatmul.bf16.gmra.mxu0 %v408
    %v422 = vpop.f32.mrf.mxu0
    %v423 = vadd.f32 0.0, %v422
    %v424 = vpop.f32.mrf.mxu0
    %425 = vdwg.mxu0
    %427 = vrot.lane.b32.xlu0 %v423, 16
    %v428 = vpop.permute.xlu0 %427
    %v430 = vsel %vm197, %v367, %v428
    %v431 = vpack.c.bf16 %v430, %v312
    %v432 = vld [vmem:[%s6] sm:$0xf]
    %v433 = vld [vmem:[%s6 + $0x4] sm:$0xf]
    %v434 = vld [vmem:[%s6 + $0x8] sm:$0xf]
    %v435 = vld [vmem:[%s6 + $0xc] sm:$0xf]
    %v436 = vld [vmem:[%s7] sm:$0x1]
    %v438 = vperm.slane %v436, 0
    %v444 = vunpack.c.l.b16 %v432
    %v445 = vunpack.c.l.b16 %v433
    %v446 = vunpack.c.l.b16 %v434
    %v447 = vunpack.c.l.b16 %v435
    %v448 = vpack.c.b16 %v445, %v444
    %v449 = vpack.c.b16 %v447, %v446
    %v453 = vsel %vm90, %v431, 0
    %455 = vmatpush.bf16.msra.mxu0 0
    %456 = vmatpush.bf16.msra.mxu0 0
    %457 = vmatpush.bf16.msra.mxu0 0
    %458 = vmatpush.bf16.msra.mxu0 0
    %459 = vmatpush.bf16.msra.mxu0 0
    %460 = vmatpush.bf16.msra.mxu0 0
    %461 = vmatpush.bf16.msra.mxu0 %v449
    %462 = vmatpush.bf16.msra.mxu0 %v448
    %463 = vmatmul.bf16.gmra.mxu0 %v453
    %v464 = vpop.f32.mrf.mxu0
    %v465 = vadd.f32 %v438, %v464
    %v466 = vpop.f32.mrf.mxu0
    %v467 = vadd.f32 %v438, %v466
    %468 = vdwg.mxu0
    %v469 = vadd.f32 %v465, %v150
    %v470 = vadd.f32 %v467, %v151
    %v471 = vld [vmem:[%s8] sm:$0x1]
    %v472 = vld [vmem:[%s9] sm:$0x1]
    %v473 = vsel %vm90, %v469, 0.0
    %474 = vadd.xlane.f32.xlu0 %v473
    %v475 = vpop.xlane.xlu0 %474
    %v476 = vsel %vm90, %v470, 0.0
    %477 = vadd.xlane.f32.xlu0 %v476
    %v478 = vpop.xlane.xlu0 %477
    %v479 = vmul.f32 %v475, %v103
    %v480 = vmul.f32 %v478, %v103
    %v481 = vsub.f32 %v469, %v479
    %v482 = vsub.f32 %v470, %v480
    %v483 = vmul.f32 %v481, %v481
    %v484 = vmul.f32 %v482, %v482
    %v485 = vsel %vm90, %v483, 0.0
    %486 = vadd.xlane.f32.xlu0 %v485
    %v487 = vpop.xlane.xlu0 %486
    %v488 = vsel %vm90, %v484, 0.0
    %489 = vadd.xlane.f32.xlu0 %v488
    %v490 = vpop.xlane.xlu0 %489
    %v491 = vmul.f32 %v487, %v103
    %v492 = vmul.f32 %v490, %v103
    %v493 = vadd.f32 %v491, 1e-12
    %v494 = vadd.f32 %v492, 1e-12
    %v495 = vrsqrt.pop %v493
    %v496 = vmul.f32 %v495, %v493
    %v497 = vmul.f32 %v496, %v495
    %v498 = vmul.f32 0.5, %v497
    %v499 = vsub.f32 1.5, %v498
    %v500 = vmul.f32 %v495, %v499
    %vm501 = vweird.f32 %v493
    %vm502 = vweird.f32 %v495
    %vm503 = vmor %vm501, %vm502
    %v504 = vsel %vm503, %v495, %v500
    %v505 = vrsqrt.pop %v494
    %v506 = vmul.f32 %v505, %v494
    %v507 = vmul.f32 %v506, %v505
    %v508 = vmul.f32 0.5, %v507
    %v509 = vsub.f32 1.5, %v508
    %v510 = vmul.f32 %v505, %v509
    %vm511 = vweird.f32 %v494
    %vm512 = vweird.f32 %v505
    %vm513 = vmor %vm511, %vm512
    %v514 = vsel %vm513, %v505, %v510
    %v515 = vmul.f32 %v481, %v504
    %v516 = vmul.f32 %v482, %v514
    %v518 = vperm.slane %v471, 0
    %v520 = vmul.f32 %v515, %v518
    %v521 = vmul.f32 %v516, %v518
    %v523 = vperm.slane %v472, 0
    %v525 = vadd.f32 %v520, %v523
    %v526 = vadd.f32 %v521, %v523
    %v527 = vpack.c.bf16 %v526, %v525
    %v528 = vld [vmem:[%s10] sm:$0xf]
    %v529 = vld [vmem:[%s10 + $0x4] sm:$0xf]
    %v530 = vld [vmem:[%s10 + $0x8] sm:$0xf]
    %v531 = vld [vmem:[%s10 + $0xc] sm:$0xf]
    %v532 = vld [vmem:[%s11] sm:$0x1]
    %v534 = vperm.slane %v532, 0
    %v540 = vunpack.c.l.b16 %v528
    %v541 = vunpack.c.l.b16 %v529
    %v542 = vunpack.c.l.b16 %v530
    %v543 = vunpack.c.l.b16 %v531
    %v544 = vpack.c.b16 %v541, %v540
    %v545 = vpack.c.b16 %v543, %v542
    %v549 = vsel %vm90, %v527, 0
    %551 = vmatpush.bf16.msra.mxu0 0
    %552 = vmatpush.bf16.msra.mxu0 0
    %553 = vmatpush.bf16.msra.mxu0 0
    %554 = vmatpush.bf16.msra.mxu0 0
    %555 = vmatpush.bf16.msra.mxu0 0
    %556 = vmatpush.bf16.msra.mxu0 0
    %557 = vmatpush.bf16.msra.mxu0 %v545
    %558 = vmatpush.bf16.msra.mxu0 %v544
    %559 = vmatmul.bf16.gmra.mxu0 %v549
    %v560 = vpop.f32.mrf.mxu0
    %v561 = vadd.f32 %v534, %v560
    %v562 = vpop.f32.mrf.mxu0
    %v563 = vadd.f32 %v534, %v562
    %564 = vdwg.mxu0
    %v565 = vmul.f32 %v561, 0.5
    %v566 = vmul.f32 %v563, 0.5
    %v567 = vmul.f32 %v561, 0.044715
    %v568 = vmul.f32 %v563, 0.044715
    %v569 = vmul.f32 %v567, %v561
    %v570 = vmul.f32 %v568, %v563
    %v571 = vmul.f32 %v569, %v561
    %v572 = vmul.f32 %v570, %v563
    %v573 = vadd.f32 %v561, %v571
    %v574 = vadd.f32 %v563, %v572
    %v575 = vmul.f32 %v573, 0.7978846
    %v576 = vmul.f32 %v574, 0.7978846
    %v577 = vtanh.pop %v575
    %v578 = vtanh.pop %v576
    %v579 = vadd.f32 %v577, 1.0
    %v580 = vadd.f32 %v578, 1.0
    %v581 = vmul.f32 %v565, %v579
    %v582 = vmul.f32 %v566, %v580
    %v583 = vpack.c.bf16 %v582, %v581
    %v584 = vld [vmem:[%s12] sm:$0xf]
    %v585 = vld [vmem:[%s12 + $0x4] sm:$0xf]
    %v586 = vld [vmem:[%s12 + $0x8] sm:$0xf]
    %v587 = vld [vmem:[%s12 + $0xc] sm:$0xf]
    %v588 = vld [vmem:[%s12 + $0x10] sm:$0xf]
    %v589 = vld [vmem:[%s12 + $0x14] sm:$0xf]
    %v590 = vld [vmem:[%s12 + $0x18] sm:$0xf]
    %v591 = vld [vmem:[%s12 + $0x1c] sm:$0xf]
    %v592 = vld [vmem:[%s12 + $0x20] sm:$0xf]
    %v593 = vld [vmem:[%s12 + $0x24] sm:$0xf]
    %v594 = vld [vmem:[%s12 + $0x28] sm:$0xf]
    %v595 = vld [vmem:[%s12 + $0x2c] sm:$0xf]
    %v596 = vld [vmem:[%s12 + $0x30] sm:$0xf]
    %v597 = vld [vmem:[%s12 + $0x34] sm:$0xf]
    %v598 = vld [vmem:[%s12 + $0x38] sm:$0xf]
    %v599 = vld [vmem:[%s12 + $0x3c] sm:$0xf]
    %v600 = vld [vmem:[%s13] sm:$0x1]
    %v602 = vperm.slane %v600, 0
    %v620 = vunpack.c.l.b16 %v584
    %v621 = vunpack.c.l.b16 %v585
    %v622 = vunpack.c.l.b16 %v586
    %v623 = vunpack.c.l.b16 %v587
    %v624 = vunpack.c.l.b16 %v588
    %v625 = vunpack.c.l.b16 %v589
    %v626 = vunpack.c.l.b16 %v590
    %v627 = vunpack.c.l.b16 %v591
    %v628 = vunpack.c.l.b16 %v592
    %v629 = vunpack.c.l.b16 %v593
    %v630 = vunpack.c.l.b16 %v594
    %v631 = vunpack.c.l.b16 %v595
    %v632 = vunpack.c.l.b16 %v596
    %v633 = vunpack.c.l.b16 %v597
    %v634 = vunpack.c.l.b16 %v598
    %v635 = vunpack.c.l.b16 %v599
    %v636 = vpack.c.b16 %v621, %v620
    %v637 = vpack.c.b16 %v623, %v622
    %v638 = vpack.c.b16 %v625, %v624
    %v639 = vpack.c.b16 %v627, %v626
    %v640 = vpack.c.b16 %v629, %v628
    %v641 = vpack.c.b16 %v631, %v630
    %v642 = vpack.c.b16 %v633, %v632
    %v643 = vpack.c.b16 %v635, %v634
    %652 = vmatpush.bf16.msra.mxu0 %v643
    %653 = vmatpush.bf16.msra.mxu0 %v642
    %654 = vmatpush.bf16.msra.mxu0 %v641
    %655 = vmatpush.bf16.msra.mxu0 %v640
    %656 = vmatpush.bf16.msra.mxu0 %v639
    %657 = vmatpush.bf16.msra.mxu0 %v638
    %658 = vmatpush.bf16.msra.mxu0 %v637
    %659 = vmatpush.bf16.msra.mxu0 %v636
    %660 = vmatmul.bf16.gmra.mxu0 %v583
    %v661 = vpop.f32.mrf.mxu0
    %v662 = vadd.f32 %v602, %v661
    %v663 = vpop.f32.mrf.mxu0
    %v664 = vadd.f32 %v602, %v663
    %665 = vdwg.mxu0
    %v666 = vadd.f32 %v662, %v525
    %v667 = vadd.f32 %v664, %v526
    %v668 = vld [vmem:[%s14] sm:$0x1]
    %v669 = vld [vmem:[%s15] sm:$0x1]
    %v670 = vsel %vm90, %v666, 0.0
    %671 = vadd.xlane.f32.xlu0 %v670
    %v672 = vpop.xlane.xlu0 %671
    %v673 = vsel %vm90, %v667, 0.0
    %674 = vadd.xlane.f32.xlu0 %v673
    %v675 = vpop.xlane.xlu0 %674
    %v676 = vmul.f32 %v672, %v103
    %v677 = vmul.f32 %v675, %v103
    %v678 = vsub.f32 %v666, %v676
    %v679 = vsub.f32 %v667, %v677
    %v680 = vmul.f32 %v678, %v678
    %v681 = vmul.f32 %v679, %v679
    %v682 = vsel %vm90, %v680, 0.0
    %683 = vadd.xlane.f32.xlu0 %v682
    %v684 = vpop.xlane.xlu0 %683
    %v685 = vsel %vm90, %v681, 0.0
    %686 = vadd.xlane.f32.xlu0 %v685
    %v687 = vpop.xlane.xlu0 %686
    %v688 = vmul.f32 %v684, %v103
    %v689 = vmul.f32 %v687, %v103
    %v690 = vadd.f32 %v688, 1e-12
    %v691 = vadd.f32 %v689, 1e-12
    %v692 = vrsqrt.pop %v690
    %v693 = vmul.f32 %v692, %v690
    %v694 = vmul.f32 %v693, %v692
    %v695 = vmul.f32 0.5, %v694
    %v696 = vsub.f32 1.5, %v695
    %v697 = vmul.f32 %v692, %v696
    %vm698 = vweird.f32 %v690
    %vm699 = vweird.f32 %v692
    %vm700 = vmor %vm698, %vm699
    %v701 = vsel %vm700, %v692, %v697
    %v702 = vrsqrt.pop %v691
    %v703 = vmul.f32 %v702, %v691
    %v704 = vmul.f32 %v703, %v702
    %v705 = vmul.f32 0.5, %v704
    %v706 = vsub.f32 1.5, %v705
    %v707 = vmul.f32 %v702, %v706
    %vm708 = vweird.f32 %v691
    %vm709 = vweird.f32 %v702
    %vm710 = vmor %vm708, %vm709
    %v711 = vsel %vm710, %v702, %v707
    %v712 = vmul.f32 %v678, %v701
    %v713 = vmul.f32 %v679, %v711
    %v715 = vperm.slane %v668, 0
    %v717 = vmul.f32 %v712, %v715
    %v718 = vmul.f32 %v713, %v715
    %v720 = vperm.slane %v669, 0
    %v722 = vadd.f32 %v717, %v720
    %v723 = vadd.f32 %v718, %v720
    %v724 = vpack.c.bf16 %v723, %v722
    %s725 = scalar_lea.vmem %s4, 16
    %v726 = vld [vmem:[%s725] sm:$0xf]
    %v727 = vld [vmem:[%s725 + $0x4] sm:$0xf]
    %v728 = vld [vmem:[%s725 + $0x8] sm:$0xf]
    %v729 = vld [vmem:[%s725 + $0xc] sm:$0xf]
    %s730 = scalar_lea.vmem %s5, 1
    %v731 = vld [vmem:[%s730] sm:$0x1]
    %v733 = vperm.slane %v731, 0
    %v739 = vunpack.c.l.b16 %v726
    %v740 = vunpack.c.l.b16 %v727
    %v741 = vunpack.c.l.b16 %v728
    %v742 = vunpack.c.l.b16 %v729
    %v743 = vpack.c.b16 %v740, %v739
    %v744 = vpack.c.b16 %v742, %v741
    %v748 = vsel %vm90, %v724, 0
    %750 = vmatpush.bf16.msra.mxu0 0
    %751 = vmatpush.bf16.msra.mxu0 0
    %752 = vmatpush.bf16.msra.mxu0 0
    %753 = vmatpush.bf16.msra.mxu0 0
    %754 = vmatpush.bf16.msra.mxu0 0
    %755 = vmatpush.bf16.msra.mxu0 0
    %756 = vmatpush.bf16.msra.mxu0 %v744
    %757 = vmatpush.bf16.msra.mxu0 %v743
    %758 = vmatmul.bf16.gmra.mxu0 %v748
    %v759 = vpop.f32.mrf.mxu0
    %v760 = vadd.f32 %v733, %v759
    %v761 = vpop.f32.mrf.mxu0
    %v762 = vadd.f32 %v733, %v761
    %763 = vdwg.mxu0
    %v764 = vpack.c.bf16 %v760, %v760
    %v765 = vpack.c.bf16 %v762, %v762
    %v767 = vunpack.c.l.b16 %v764
    %v768 = vpack.c.b16 %v767, %v767
    %769 = vrot.lane.b32.xlu0 %v768, 96
    %v770 = vpop.permute.xlu0 %769
    %v772 = vsel %vm197, %v764, 0
    %v775 = vsel %vm197, %v770, 0
    %777 = vmatpush.bf16.xpose.msra.mxu0 0
    %778 = vmatpush.bf16.xpose.msra.mxu0 0
    %779 = vmatpush.bf16.xpose.msra.mxu0 0
    %780 = vmatpush.bf16.xpose.msra.mxu0 0
    %781 = vmatpush.bf16.xpose.msra.mxu0 0
    %782 = vmatpush.bf16.xpose.msra.mxu0 0
    %783 = vmatpush.bf16.xpose.msra.mxu0 0
    %784 = vmatpush.bf16.xpose.msra.mxu0 %v775
    %785 = vmatmul.bf16.gmra.mxu0 %v772
    %v786 = vpop.f32.mrf.mxu0
    %v787 = vadd.f32 %v86, %v786
    %v788 = vpop.f32.mrf.mxu0
    %789 = vdwg.mxu0
    %v790 = vsel %vm217, %v787, -inf
    %791 = vmax.xlane.f32.xlu0 %v790
    %v792 = vpop.xlane.xlu0 %791
    %v793 = vsub.f32 %v787, %v792
    %v794 = vmul.f32 %v793, 1.442695
    %v795 = vpow.pop %v794
    %v796 = vsel %vm217, %v795, 0.0
    %797 = vadd.xlane.f32.xlu0 %v796
    %v798 = vpop.xlane.xlu0 %797
    %v799 = vrcp.pop %v798
    %v800 = vmul.f32 %v795, %v799
    %v801 = vpack.c.bf16 %v800, %v800
    %802 = vrot.lane.b32.xlu0 %v768, 64
    %v803 = vpop.permute.xlu0 %802
    %v805 = vsel %vm217, %v801, 0
    %v808 = vsel %vm235, %v803, 0
    %810 = vmatpush.bf16.msra.mxu0 0
    %811 = vmatpush.bf16.msra.mxu0 0
    %812 = vmatpush.bf16.msra.mxu0 0
    %813 = vmatpush.bf16.msra.mxu0 0
    %814 = vmatpush.bf16.msra.mxu0 0
    %815 = vmatpush.bf16.msra.mxu0 0
    %816 = vmatpush.bf16.msra.mxu0 0
    %817 = vmatpush.bf16.msra.mxu0 %v808
    %818 = vmatmul.bf16.gmra.mxu0 %v805
    %v819 = vpop.f32.mrf.mxu0
    %v820 = vadd.f32 0.0, %v819
    %v821 = vpop.f32.mrf.mxu0
    %822 = vdwg.mxu0
    %823 = vrot.lane.b32.xlu0 %v768, 112
    %v824 = vpop.permute.xlu0 %823
    %825 = vrot.lane.b32.xlu0 %v768, 80
    %v826 = vpop.permute.xlu0 %825
    %v828 = vsel %vm197, %v824, 0
    %v831 = vsel %vm197, %v826, 0
    %833 = vmatpush.bf16.xpose.msra.mxu0 0
    %834 = vmatpush.bf16.xpose.msra.mxu0 0
    %835 = vmatpush.bf16.xpose.msra.mxu0 0
    %836 = vmatpush.bf16.xpose.msra.mxu0 0
    %837 = vmatpush.bf16.xpose.msra.mxu0 0
    %838 = vmatpush.bf16.xpose.msra.mxu0 0
    %839 = vmatpush.bf16.xpose.msra.mxu0 0
    %840 = vmatpush.bf16.xpose.msra.mxu0 %v831
    %841 = vmatmul.bf16.gmra.mxu0 %v828
    %v842 = vpop.f32.mrf.mxu0
    %v843 = vadd.f32 %v86, %v842
    %v844 = vpop.f32.mrf.mxu0
    %845 = vdwg.mxu0
    %v846 = vsel %vm217, %v843, -inf
    %847 = vmax.xlane.f32.xlu0 %v846
    %v848 = vpop.xlane.xlu0 %847
    %v849 = vsub.f32 %v843, %v848
    %v850 = vmul.f32 %v849, 1.442695
    %v851 = vpow.pop %v850
    %v852 = vsel %vm217, %v851, 0.0
    %853 = vadd.xlane.f32.xlu0 %v852
    %v854 = vpop.xlane.xlu0 %853
    %v855 = vrcp.pop %v854
    %v856 = vmul.f32 %v851, %v855
    %v857 = vpack.c.bf16 %v856, %v856
    %858 = vrot.lane.b32.xlu0 %v768, 48
    %v859 = vpop.permute.xlu0 %858
    %v861 = vsel %vm217, %v857, 0
    %v864 = vsel %vm235, %v859, 0
    %866 = vmatpush.bf16.msra.mxu0 0
    %867 = vmatpush.bf16.msra.mxu0 0
    %868 = vmatpush.bf16.msra.mxu0 0
    %869 = vmatpush.bf16.msra.mxu0 0
    %870 = vmatpush.bf16.msra.mxu0 0
    %871 = vmatpush.bf16.msra.mxu0 0
    %872 = vmatpush.bf16.msra.mxu0 0
    %873 = vmatpush.bf16.msra.mxu0 %v864
    %874 = vmatmul.bf16.gmra.mxu0 %v861
    %v875 = vpop.f32.mrf.mxu0
    %v876 = vadd.f32 0.0, %v875
    %v877 = vpop.f32.mrf.mxu0
    %878 = vdwg.mxu0
    %880 = vrot.lane.b32.xlu0 %v876, 16
    %v881 = vpop.permute.xlu0 %880
    %v883 = vsel %vm197, %v820, %v881
    %v885 = vunpack.c.l.b16 %v765
    %v886 = vpack.c.b16 %v885, %v885
    %887 = vrot.lane.b32.xlu0 %v886, 96
    %v888 = vpop.permute.xlu0 %887
    %v890 = vsel %vm197, %v765, 0
    %v893 = vsel %vm197, %v888, 0
    %895 = vmatpush.bf16.xpose.msra.mxu0 0
    %896 = vmatpush.bf16.xpose.msra.mxu0 0
    %897 = vmatpush.bf16.xpose.msra.mxu0 0
    %898 = vmatpush.bf16.xpose.msra.mxu0 0
    %899 = vmatpush.bf16.xpose.msra.mxu0 0
    %900 = vmatpush.bf16.xpose.msra.mxu0 0
    %901 = vmatpush.bf16.xpose.msra.mxu0 0
    %902 = vmatpush.bf16.xpose.msra.mxu0 %v893
    %903 = vmatmul.bf16.gmra.mxu0 %v890
    %v904 = vpop.f32.mrf.mxu0
    %v905 = vadd.f32 %v87, %v904
    %v906 = vpop.f32.mrf.mxu0
    %907 = vdwg.mxu0
    %v908 = vsel %vm217, %v905, -inf
    %909 = vmax.xlane.f32.xlu0 %v908
    %v910 = vpop.xlane.xlu0 %909
    %v911 = vsub.f32 %v905, %v910
    %v912 = vmul.f32 %v911, 1.442695
    %v913 = vpow.pop %v912
    %v914 = vsel %vm217, %v913, 0.0
    %915 = vadd.xlane.f32.xlu0 %v914
    %v916 = vpop.xlane.xlu0 %915
    %v917 = vrcp.pop %v916
    %v918 = vmul.f32 %v913, %v917
    %v919 = vpack.c.bf16 %v918, %v918
    %920 = vrot.lane.b32.xlu0 %v886, 64
    %v921 = vpop.permute.xlu0 %920
    %v923 = vsel %vm217, %v919, 0
    %v926 = vsel %vm235, %v921, 0
    %928 = vmatpush.bf16.msra.mxu0 0
    %929 = vmatpush.bf16.msra.mxu0 0
    %930 = vmatpush.bf16.msra.mxu0 0
    %931 = vmatpush.bf16.msra.mxu0 0
    %932 = vmatpush.bf16.msra.mxu0 0
    %933 = vmatpush.bf16.msra.mxu0 0
    %934 = vmatpush.bf16.msra.mxu0 0
    %935 = vmatpush.bf16.msra.mxu0 %v926
    %936 = vmatmul.bf16.gmra.mxu0 %v923
    %v937 = vpop.f32.mrf.mxu0
    %v938 = vadd.f32 0.0, %v937
    %v939 = vpop.f32.mrf.mxu0
    %940 = vdwg.mxu0
    %941 = vrot.lane.b32.xlu0 %v886, 112
    %v942 = vpop.permute.xlu0 %941
    %943 = vrot.lane.b32.xlu0 %v886, 80
    %v944 = vpop.permute.xlu0 %943
    %v946 = vsel %vm197, %v942, 0
    %v949 = vsel %vm197, %v944, 0
    %951 = vmatpush.bf16.xpose.msra.mxu0 0
    %952 = vmatpush.bf16.xpose.msra.mxu0 0
    %953 = vmatpush.bf16.xpose.msra.mxu0 0
    %954 = vmatpush.bf16.xpose.msra.mxu0 0
    %955 = vmatpush.bf16.xpose.msra.mxu0 0
    %956 = vmatpush.bf16.xpose.msra.mxu0 0
    %957 = vmatpush.bf16.xpose.msra.mxu0 0
    %958 = vmatpush.bf16.xpose.msra.mxu0 %v949
    %959 = vmatmul.bf16.gmra.mxu0 %v946
    %v960 = vpop.f32.mrf.mxu0
    %v961 = vadd.f32 %v87, %v960
    %v962 = vpop.f32.mrf.mxu0
    %963 = vdwg.mxu0
    %v964 = vsel %vm217, %v961, -inf
    %965 = vmax.xlane.f32.xlu0 %v964
    %v966 = vpop.xlane.xlu0 %965
    %v967 = vsub.f32 %v961, %v966
    %v968 = vmul.f32 %v967, 1.442695
    %v969 = vpow.pop %v968
    %v970 = vsel %vm217, %v969, 0.0
    %971 = vadd.xlane.f32.xlu0 %v970
    %v972 = vpop.xlane.xlu0 %971
    %v973 = vrcp.pop %v972
    %v974 = vmul.f32 %v969, %v973
    %v975 = vpack.c.bf16 %v974, %v974
    %976 = vrot.lane.b32.xlu0 %v886, 48
    %v977 = vpop.permute.xlu0 %976
    %v979 = vsel %vm217, %v975, 0
    %v982 = vsel %vm235, %v977, 0
    %984 = vmatpush.bf16.msra.mxu0 0
    %985 = vmatpush.bf16.msra.mxu0 0
    %986 = vmatpush.bf16.msra.mxu0 0
    %987 = vmatpush.bf16.msra.mxu0 0
    %988 = vmatpush.bf16.msra.mxu0 0
    %989 = vmatpush.bf16.msra.mxu0 0
    %990 = vmatpush.bf16.msra.mxu0 0
    %991 = vmatpush.bf16.msra.mxu0 %v982
    %992 = vmatmul.bf16.gmra.mxu0 %v979
    %v993 = vpop.f32.mrf.mxu0
    %v994 = vadd.f32 0.0, %v993
    %v995 = vpop.f32.mrf.mxu0
    %996 = vdwg.mxu0
    %998 = vrot.lane.b32.xlu0 %v994, 16
    %v999 = vpop.permute.xlu0 %998
    %v1001 = vsel %vm197, %v938, %v999
    %v1002 = vpack.c.bf16 %v1001, %v883
    %s1003 = scalar_lea.vmem %s6, 16
    %v1004 = vld [vmem:[%s1003] sm:$0xf]
    %v1005 = vld [vmem:[%s1003 + $0x4] sm:$0xf]
    %v1006 = vld [vmem:[%s1003 + $0x8] sm:$0xf]
    %v1007 = vld [vmem:[%s1003 + $0xc] sm:$0xf]
    %s1008 = scalar_lea.vmem %s7, 1
    %v1009 = vld [vmem:[%s1008] sm:$0x1]
    %v1011 = vperm.slane %v1009, 0
    %v1017 = vunpack.c.l.b16 %v1004
    %v1018 = vunpack.c.l.b16 %v1005
    %v1019 = vunpack.c.l.b16 %v1006
    %v1020 = vunpack.c.l.b16 %v1007
    %v1021 = vpack.c.b16 %v1018, %v1017
    %v1022 = vpack.c.b16 %v1020, %v1019
    %v1026 = vsel %vm90, %v1002, 0
    %1028 = vmatpush.bf16.msra.mxu0 0
    %1029 = vmatpush.bf16.msra.mxu0 0
    %1030 = vmatpush.bf16.msra.mxu0 0
    %1031 = vmatpush.bf16.msra.mxu0 0
    %1032 = vmatpush.bf16.msra.mxu0 0
    %1033 = vmatpush.bf16.msra.mxu0 0
    %1034 = vmatpush.bf16.msra.mxu0 %v1022
    %1035 = vmatpush.bf16.msra.mxu0 %v1021
    %1036 = vmatmul.bf16.gmra.mxu0 %v1026
    %v1037 = vpop.f32.mrf.mxu0
    %v1038 = vadd.f32 %v1011, %v1037
    %v1039 = vpop.f32.mrf.mxu0
    %v1040 = vadd.f32 %v1011, %v1039
    %1041 = vdwg.mxu0
    %v1042 = vadd.f32 %v1038, %v722
    %v1043 = vadd.f32 %v1040, %v723
    %s1044 = scalar_lea.vmem %s8, 1
    %v1045 = vld [vmem:[%s1044] sm:$0x1]
    %s1046 = scalar_lea.vmem %s9, 1
    %v1047 = vld [vmem:[%s1046] sm:$0x1]
    %v1048 = vsel %vm90, %v1042, 0.0
    %1049 = vadd.xlane.f32.xlu0 %v1048
    %v1050 = vpop.xlane.xlu0 %1049
    %v1051 = vsel %vm90, %v1043, 0.0
    %1052 = vadd.xlane.f32.xlu0 %v1051
    %v1053 = vpop.xlane.xlu0 %1052
    %v1054 = vmul.f32 %v1050, %v103
    %v1055 = vmul.f32 %v1053, %v103
    %v1056 = vsub.f32 %v1042, %v1054
    %v1057 = vsub.f32 %v1043, %v1055
    %v1058 = vmul.f32 %v1056, %v1056
    %v1059 = vmul.f32 %v1057, %v1057
    %v1060 = vsel %vm90, %v1058, 0.0
    %1061 = vadd.xlane.f32.xlu0 %v1060
    %v1062 = vpop.xlane.xlu0 %1061
    %v1063 = vsel %vm90, %v1059, 0.0
    %1064 = vadd.xlane.f32.xlu0 %v1063
    %v1065 = vpop.xlane.xlu0 %1064
    %v1066 = vmul.f32 %v1062, %v103
    %v1067 = vmul.f32 %v1065, %v103
    %v1068 = vadd.f32 %v1066, 1e-12
    %v1069 = vadd.f32 %v1067, 1e-12
    %v1070 = vrsqrt.pop %v1068
    %v1071 = vmul.f32 %v1070, %v1068
    %v1072 = vmul.f32 %v1071, %v1070
    %v1073 = vmul.f32 0.5, %v1072
    %v1074 = vsub.f32 1.5, %v1073
    %v1075 = vmul.f32 %v1070, %v1074
    %vm1076 = vweird.f32 %v1068
    %vm1077 = vweird.f32 %v1070
    %vm1078 = vmor %vm1076, %vm1077
    %v1079 = vsel %vm1078, %v1070, %v1075
    %v1080 = vrsqrt.pop %v1069
    %v1081 = vmul.f32 %v1080, %v1069
    %v1082 = vmul.f32 %v1081, %v1080
    %v1083 = vmul.f32 0.5, %v1082
    %v1084 = vsub.f32 1.5, %v1083
    %v1085 = vmul.f32 %v1080, %v1084
    %vm1086 = vweird.f32 %v1069
    %vm1087 = vweird.f32 %v1080
    %vm1088 = vmor %vm1086, %vm1087
    %v1089 = vsel %vm1088, %v1080, %v1085
    %v1090 = vmul.f32 %v1056, %v1079
    %v1091 = vmul.f32 %v1057, %v1089
    %v1093 = vperm.slane %v1045, 0
    %v1095 = vmul.f32 %v1090, %v1093
    %v1096 = vmul.f32 %v1091, %v1093
    %v1098 = vperm.slane %v1047, 0
    %v1100 = vadd.f32 %v1095, %v1098
    %v1101 = vadd.f32 %v1096, %v1098
    %v1102 = vpack.c.bf16 %v1101, %v1100
    %s1103 = scalar_lea.vmem %s10, 16
    %v1104 = vld [vmem:[%s1103] sm:$0xf]
    %v1105 = vld [vmem:[%s1103 + $0x4] sm:$0xf]
    %v1106 = vld [vmem:[%s1103 + $0x8] sm:$0xf]
    %v1107 = vld [vmem:[%s1103 + $0xc] sm:$0xf]
    %s1108 = scalar_lea.vmem %s11, 1
    %v1109 = vld [vmem:[%s1108] sm:$0x1]
    %v1111 = vperm.slane %v1109, 0
    %v1117 = vunpack.c.l.b16 %v1104
    %v1118 = vunpack.c.l.b16 %v1105
    %v1119 = vunpack.c.l.b16 %v1106
    %v1120 = vunpack.c.l.b16 %v1107
    %v1121 = vpack.c.b16 %v1118, %v1117
    %v1122 = vpack.c.b16 %v1120, %v1119
    %v1126 = vsel %vm90, %v1102, 0
    %1128 = vmatpush.bf16.msra.mxu0 0
    %1129 = vmatpush.bf16.msra.mxu0 0
    %1130 = vmatpush.bf16.msra.mxu0 0
    %1131 = vmatpush.bf16.msra.mxu0 0
    %1132 = vmatpush.bf16.msra.mxu0 0
    %1133 = vmatpush.bf16.msra.mxu0 0
    %1134 = vmatpush.bf16.msra.mxu0 %v1122
    %1135 = vmatpush.bf16.msra.mxu0 %v1121
    %1136 = vmatmul.bf16.gmra.mxu0 %v1126
    %v1137 = vpop.f32.mrf.mxu0
    %v1138 = vadd.f32 %v1111, %v1137
    %v1139 = vpop.f32.mrf.mxu0
    %v1140 = vadd.f32 %v1111, %v1139
    %1141 = vdwg.mxu0
    %v1142 = vmul.f32 %v1138, 0.5
    %v1143 = vmul.f32 %v1140, 0.5
    %v1144 = vmul.f32 %v1138, 0.044715
    %v1145 = vmul.f32 %v1140, 0.044715
    %v1146 = vmul.f32 %v1144, %v1138
    %v1147 = vmul.f32 %v1145, %v1140
    %v1148 = vmul.f32 %v1146, %v1138
    %v1149 = vmul.f32 %v1147, %v1140
    %v1150 = vadd.f32 %v1138, %v1148
    %v1151 = vadd.f32 %v1140, %v1149
    %v1152 = vmul.f32 %v1150, 0.7978846
    %v1153 = vmul.f32 %v1151, 0.7978846
    %v1154 = vtanh.pop %v1152
    %v1155 = vtanh.pop %v1153
    %v1156 = vadd.f32 %v1154, 1.0
    %v1157 = vadd.f32 %v1155, 1.0
    %v1158 = vmul.f32 %v1142, %v1156
    %v1159 = vmul.f32 %v1143, %v1157
    %v1160 = vpack.c.bf16 %v1159, %v1158
    %s1161 = scalar_lea.vmem %s12, 64
    %v1162 = vld [vmem:[%s1161] sm:$0xf]
    %v1163 = vld [vmem:[%s1161 + $0x4] sm:$0xf]
    %v1164 = vld [vmem:[%s1161 + $0x8] sm:$0xf]
    %v1165 = vld [vmem:[%s1161 + $0xc] sm:$0xf]
    %v1166 = vld [vmem:[%s1161 + $0x10] sm:$0xf]
    %v1167 = vld [vmem:[%s1161 + $0x14] sm:$0xf]
    %v1168 = vld [vmem:[%s1161 + $0x18] sm:$0xf]
    %v1169 = vld [vmem:[%s1161 + $0x1c] sm:$0xf]
    %v1170 = vld [vmem:[%s1161 + $0x20] sm:$0xf]
    %v1171 = vld [vmem:[%s1161 + $0x24] sm:$0xf]
    %v1172 = vld [vmem:[%s1161 + $0x28] sm:$0xf]
    %v1173 = vld [vmem:[%s1161 + $0x2c] sm:$0xf]
    %v1174 = vld [vmem:[%s1161 + $0x30] sm:$0xf]
    %v1175 = vld [vmem:[%s1161 + $0x34] sm:$0xf]
    %v1176 = vld [vmem:[%s1161 + $0x38] sm:$0xf]
    %v1177 = vld [vmem:[%s1161 + $0x3c] sm:$0xf]
    %s1178 = scalar_lea.vmem %s13, 1
    %v1179 = vld [vmem:[%s1178] sm:$0x1]
    %v1181 = vperm.slane %v1179, 0
    %v1199 = vunpack.c.l.b16 %v1162
    %v1200 = vunpack.c.l.b16 %v1163
    %v1201 = vunpack.c.l.b16 %v1164
    %v1202 = vunpack.c.l.b16 %v1165
    %v1203 = vunpack.c.l.b16 %v1166
    %v1204 = vunpack.c.l.b16 %v1167
    %v1205 = vunpack.c.l.b16 %v1168
    %v1206 = vunpack.c.l.b16 %v1169
    %v1207 = vunpack.c.l.b16 %v1170
    %v1208 = vunpack.c.l.b16 %v1171
    %v1209 = vunpack.c.l.b16 %v1172
    %v1210 = vunpack.c.l.b16 %v1173
    %v1211 = vunpack.c.l.b16 %v1174
    %v1212 = vunpack.c.l.b16 %v1175
    %v1213 = vunpack.c.l.b16 %v1176
    %v1214 = vunpack.c.l.b16 %v1177
    %v1215 = vpack.c.b16 %v1200, %v1199
    %v1216 = vpack.c.b16 %v1202, %v1201
    %v1217 = vpack.c.b16 %v1204, %v1203
    %v1218 = vpack.c.b16 %v1206, %v1205
    %v1219 = vpack.c.b16 %v1208, %v1207
    %v1220 = vpack.c.b16 %v1210, %v1209
    %v1221 = vpack.c.b16 %v1212, %v1211
    %v1222 = vpack.c.b16 %v1214, %v1213
    %1231 = vmatpush.bf16.msra.mxu0 %v1222
    %1232 = vmatpush.bf16.msra.mxu0 %v1221
    %1233 = vmatpush.bf16.msra.mxu0 %v1220
    %1234 = vmatpush.bf16.msra.mxu0 %v1219
    %1235 = vmatpush.bf16.msra.mxu0 %v1218
    %1236 = vmatpush.bf16.msra.mxu0 %v1217
    %1237 = vmatpush.bf16.msra.mxu0 %v1216
    %1238 = vmatpush.bf16.msra.mxu0 %v1215
    %1239 = vmatmul.bf16.gmra.mxu0 %v1160
    %v1240 = vpop.f32.mrf.mxu0
    %v1241 = vadd.f32 %v1181, %v1240
    %v1242 = vpop.f32.mrf.mxu0
    %v1243 = vadd.f32 %v1181, %v1242
    %1244 = vdwg.mxu0
    %v1245 = vadd.f32 %v1241, %v1100
    %v1246 = vadd.f32 %v1243, %v1101
    %s1247 = scalar_lea.vmem %s14, 1
    %v1248 = vld [vmem:[%s1247] sm:$0x1]
    %s1249 = scalar_lea.vmem %s15, 1
    %v1250 = vld [vmem:[%s1249] sm:$0x1]
    %v1251 = vsel %vm90, %v1245, 0.0
    %1252 = vadd.xlane.f32.xlu0 %v1251
    %v1253 = vpop.xlane.xlu0 %1252
    %v1254 = vsel %vm90, %v1246, 0.0
    %1255 = vadd.xlane.f32.xlu0 %v1254
    %v1256 = vpop.xlane.xlu0 %1255
    %v1257 = vmul.f32 %v1253, %v103
    %v1258 = vmul.f32 %v1256, %v103
    %v1259 = vsub.f32 %v1245, %v1257
    %v1260 = vsub.f32 %v1246, %v1258
    %v1261 = vmul.f32 %v1259, %v1259
    %v1262 = vmul.f32 %v1260, %v1260
    %v1263 = vsel %vm90, %v1261, 0.0
    %1264 = vadd.xlane.f32.xlu0 %v1263
    %v1265 = vpop.xlane.xlu0 %1264
    %v1266 = vsel %vm90, %v1262, 0.0
    %1267 = vadd.xlane.f32.xlu0 %v1266
    %v1268 = vpop.xlane.xlu0 %1267
    %v1269 = vmul.f32 %v1265, %v103
    %v1270 = vmul.f32 %v1268, %v103
    %v1271 = vadd.f32 %v1269, 1e-12
    %v1272 = vadd.f32 %v1270, 1e-12
    %v1273 = vrsqrt.pop %v1271
    %v1274 = vmul.f32 %v1273, %v1271
    %v1275 = vmul.f32 %v1274, %v1273
    %v1276 = vmul.f32 0.5, %v1275
    %v1277 = vsub.f32 1.5, %v1276
    %v1278 = vmul.f32 %v1273, %v1277
    %vm1279 = vweird.f32 %v1271
    %vm1280 = vweird.f32 %v1273
    %vm1281 = vmor %vm1279, %vm1280
    %v1282 = vsel %vm1281, %v1273, %v1278
    %v1283 = vrsqrt.pop %v1272
    %v1284 = vmul.f32 %v1283, %v1272
    %v1285 = vmul.f32 %v1284, %v1283
    %v1286 = vmul.f32 0.5, %v1285
    %v1287 = vsub.f32 1.5, %v1286
    %v1288 = vmul.f32 %v1283, %v1287
    %vm1289 = vweird.f32 %v1272
    %vm1290 = vweird.f32 %v1283
    %vm1291 = vmor %vm1289, %vm1290
    %v1292 = vsel %vm1291, %v1283, %v1288
    %v1293 = vmul.f32 %v1259, %v1282
    %v1294 = vmul.f32 %v1260, %v1292
    %v1296 = vperm.slane %v1248, 0
    %v1298 = vmul.f32 %v1293, %v1296
    %v1299 = vmul.f32 %v1294, %v1296
    %v1301 = vperm.slane %v1250, 0
    %v1303 = vadd.f32 %v1298, %v1301
    %v1304 = vadd.f32 %v1299, %v1301
    %v1306 = vrot.slane %v1304, 7
    %vm1308 = vcmask 1040384
    %v1309 = vsel %vm1308, %v1303, %v1306
    %v1310 = vpack.c.bf16 %v1309, %v1309
    %v1311 = vld [vmem:[%s16] sm:$0xf]
    %v1312 = vld [vmem:[%s16 + $0x4] sm:$0xf]
    %v1313 = vld [vmem:[%s16 + $0x8] sm:$0xf]
    %v1314 = vld [vmem:[%s16 + $0xc] sm:$0xf]
    %v1315 = vld [vmem:[%s17] sm:$0x1]
    %v1317 = vperm.slane %v1315, 0
    %v1323 = vunpack.c.l.b16 %v1311
    %v1324 = vunpack.c.l.b16 %v1312
    %v1325 = vunpack.c.l.b16 %v1313
    %v1326 = vunpack.c.l.b16 %v1314
    %v1327 = vpack.c.b16 %v1324, %v1323
    %v1328 = vpack.c.b16 %v1326, %v1325
    %v1332 = vsel %vm90, %v1310, 0
    %1334 = vmatpush.bf16.msra.mxu0 0
    %1335 = vmatpush.bf16.msra.mxu0 0
    %1336 = vmatpush.bf16.msra.mxu0 0
    %1337 = vmatpush.bf16.msra.mxu0 0
    %1338 = vmatpush.bf16.msra.mxu0 0
    %1339 = vmatpush.bf16.msra.mxu0 0
    %1340 = vmatpush.bf16.msra.mxu0 %v1328
    %1341 = vmatpush.bf16.msra.mxu0 %v1327
    %1342 = vmatmul.bf16.gmra.mxu0 %v1332
    %v1343 = vpop.f32.mrf.mxu0
    %v1344 = vadd.f32 %v1317, %v1343
    %v1345 = vpop.f32.mrf.mxu0
    %1346 = vdwg.mxu0
    %v1347 = vtanh.pop %v1344
    %v1348 = vpack.c.bf16 %v1347, %v1347
    %v1349 = vld [vmem:[%s18] sm:$0xf]
    %v1350 = vld [vmem:[%s18 + $0x4] sm:$0xf]
    %v1351 = vld [vmem:[%s18 + $0x8] sm:$0xf]
    %v1352 = vld [vmem:[%s18 + $0xc] sm:$0xf]
    %v1353 = vld [vmem:[%s19] sm:$0x1]
    %v1355 = vperm.slane %v1353, 0
    %v1361 = vunpack.c.l.b16 %v1349
    %v1362 = vunpack.c.l.b16 %v1350
    %v1363 = vunpack.c.l.b16 %v1351
    %v1364 = vunpack.c.l.b16 %v1352
    %v1365 = vpack.c.b16 %v1362, %v1361
    %v1366 = vpack.c.b16 %v1364, %v1363
    %v1370 = vsel %vm90, %v1348, 0
    %1372 = vmatpush.bf16.msra.mxu0 0
    %1373 = vmatpush.bf16.msra.mxu0 0
    %1374 = vmatpush.bf16.msra.mxu0 0
    %1375 = vmatpush.bf16.msra.mxu0 0
    %1376 = vmatpush.bf16.msra.mxu0 0
    %1377 = vmatpush.bf16.msra.mxu0 0
    %1378 = vmatpush.bf16.msra.mxu0 %v1366
    %1379 = vmatpush.bf16.msra.mxu0 %v1365
    %1380 = vmatmul.bf16.gmra.mxu0 %v1370
    %v1381 = vpop.f32.mrf.mxu0
    %v1382 = vadd.f32 %v1355, %v1381
    %v1383 = vpop.f32.mrf.mxu0
    %1384 = vdwg.mxu0
    %1385 = vst [vmem:[#allocation5] sm:$0x3] %v1382
    // Predicated region
    $region86: #{tpu_custom_call.1} parent=1 // pred_check
      _
    $region87: #{tpu_custom_call.1} parent=1 // pred_check_branch
      %1387 = sbr.rel (0) target = $region89
    $region88: #{tpu_custom_call.1} parent=1 // pred_region
      %1389 = vsyncadd [#allocation4], 0
      %s1391 = sshll.u32 [#allocation5], 4
      %s1392 = int_to_ptr.vmem [resolvable:$true] %s1391
      %s1393 = sshll.u32 %s20, 4
      %s1394 = int_to_ptr.hbm [resolvable:$true] %s1393
      %1396 = dma.vmem_to_hbm [thread:$0]  %s1392, 32, %s1394, [#allocation4]
    $region89: #{tpu_custom_call.1} parent=1 // pred_fallthru
      _
    // Predicated region
    $region90: #{tpu_custom_call.1} parent=1 // pred_check
      _
    $region91: #{tpu_custom_call.1} parent=1 // pred_check_branch
      %1398 = sbr.rel (0) target = $region93
    $region92: #{tpu_custom_call.1} parent=1 // pred_region
      %1400 = dma.done [#allocation4], 32
    $region93: #{tpu_custom_call.1} parent=1 // pred_fallthru
      _
    %1401 = vsyncpa [#allocation3], 1
    %1402 = vsyncpa [#allocation4], 1

</llo_original>
